<compile_context>
chip_gen: v7x
topology: tpu7x:2x2x1
jax: 0.10.0
libtpu: 0.0.40
codegen_flags: <defaults>
</compile_context>

<pallas_src>
import math

import jax
import jax.numpy as jnp
from jax import lax
from jax.experimental import pallas as pl
from jax.experimental.pallas import tpu as pltpu

_LN_EPS = 1e-5
_ROW_CHUNK = 8          # output rows processed per inner-loop step (sublane granule)


def _round_up(x, m):
    return (x + m - 1) // m * m


# ---------------------------------------------------------------------------
# Fused pairwise head (factorized LayerNorm -> FFN -> Linear(D,1) + ddg sums).
# ---------------------------------------------------------------------------
def _pair_head_kernel(fic_ref, fjct_ref, ai_ref, ajt_ref,
                      s_col_ref, s_row_ref, ddg_col_ref, ddg_row_ref,
                      b1_ref, w_ref, o_ref, inv_ref):
    d = fic_ref.shape[2]
    ti = fic_ref.shape[1]

    # Only O(TI*TJ*D) MXU work after the factorization: centered-feature
    # covariance, lane-dense [TI, TJ] result (TJ = multiple of 128).
    cov = jnp.dot(fic_ref[0], fjct_ref[0], preferred_element_type=jnp.float32)
    var = s_col_ref[0] + s_row_ref[0] + (2.0 / d) * cov          # [TI, TJ]
    inv_ref[...] = lax.rsqrt(var + _LN_EPS)                      # LN inverse std

    ajt = ajt_ref[0]                 # [D, TJ]  A_j = fj_c @ W1' (transposed)
    b1c = b1_ref[...]                # [D, 1]   b1' (LN beta folded in)
    wc = w_ref[...]                  # [D, 1]   w_eff = W2 @ w_head
    ddg_row = ddg_row_ref[0]         # [1, TJ]  mut1_ddg_j + b_eff

    def body(c, carry):
        r = pl.multiple_of(c * _ROW_CHUNK, _ROW_CHUNK)
        rows = pl.ds(r, _ROW_CHUNK)
        inv_c = inv_ref[rows, :]                       # [CH, TJ]
        ai_c = ai_ref[0, rows, :]                      # [CH, D]
        # h1[p, d, q] = inv[p, q] * (A_i[p, d] + A_j[q, d]) + b1'[d]
        h1 = inv_c[:, None, :] * (ai_c[:, :, None] + ajt[None, :, :]) + b1c
        acc = jnp.sum(jnp.maximum(h1, 0.0) * wc, axis=1)          # [CH, TJ]
        out = acc + ddg_col_ref[0, rows, :] + ddg_row
        o_ref[0, rows, :] = out.astype(o_ref.dtype)
        return carry

    lax.fori_loop(0, ti // _ROW_CHUNK, body, 0)


def epistatic_multi_decoder_forward(mut1_feat, mut1_ddg, params, *, ti=128, tj=256):
    """mut1_feat: [B, L, A, D]; mut1_ddg: [B, L, A] (pred['mut1_ddg']).

    Returns {'mut2_ddg': [B, L, A, L, A]} matching the PyTorch module's
    inference (non-chunked, no-eval_list) forward.
    """
    assert ti % 8 == 0 and ti % _ROW_CHUNK == 0 and tj % 128 == 0
    B, L, A, D = mut1_feat.shape
    N = L * A
    hp = jax.lax.Precision.HIGHEST
    f32 = jnp.float32

    # ---- Row-wise precompute (O(N*D^2)) — left to XLA per the perf review ----
    x2 = mut1_feat.reshape(B * N, D).astype(f32)
    h = jnp.maximum(jnp.dot(x2, params["aw1"], precision=hp) + params["ab1"], 0.0)
    feat = jnp.dot(h, params["aw2"], precision=hp) + params["ab2"]      # [B*N, D]

    # Trace-time weight folds.
    w1p = params["ln_g"][0][:, None] * params["hw1"]                    # [D, D]
    b1p = params["hb1"][0] + jnp.dot(params["ln_b"][0], params["hw1"], precision=hp)
    w_eff = jnp.dot(params["hw2"], params["w_head"][0], precision=hp)   # [D]
    b_eff = (jnp.dot(params["hb2"][0], params["w_head"][0], precision=hp)
             + params["b_head"][0, 0])

    # Per-row LayerNorm stats and Linear1 partials.
    mean = jnp.mean(feat, axis=-1, keepdims=True)
    fc = feat - mean                                                     # centered
    s = jnp.mean(fc * fc, axis=-1)                                       # [B*N]
    a = jnp.dot(fc, w1p, precision=hp)                                   # [B*N, D]

    # ---- Pad / lay out kernel operands --------------------------------------
    n_pad = _round_up(N, (ti * tj) // math.gcd(ti, tj))
    pad = n_pad - N

    def pad_rows(x2d):
        return jnp.pad(x2d.reshape(B, N, -1), ((0, 0), (0, pad), (0, 0)))

    fc3 = pad_rows(fc)                         # [B, n_pad, D]
    a3 = pad_rows(a)                           # [B, n_pad, D]
    fct = jnp.transpose(fc3, (0, 2, 1))        # [B, D, n_pad]
    at = jnp.transpose(a3, (0, 2, 1))          # [B, D, n_pad]

    s_p = jnp.pad(s.reshape(B, N), ((0, 0), (0, pad)))
    ddg_p = jnp.pad(mut1_ddg.reshape(B, N).astype(f32), ((0, 0), (0, pad)))
    s_col, s_row = s_p[:, :, None], s_p[:, None, :]
    ddg_col = ddg_p[:, :, None]
    ddg_row = ddg_p[:, None, :] + b_eff        # fold fused scalar bias here

    b1_col = b1p[:, None]                      # [D, 1] (sublane layout for kernel)
    w_col = w_eff[:, None]                     # [D, 1]

    gi, gj = n_pad // ti, n_pad // tj
    flops = B * n_pad * n_pad * (8 * D + 10)
    bytes_accessed = (B * n_pad * n_pad * 4
                      + 2 * B * n_pad * D * 4 * (gi + gj))

    out = pl.pallas_call(
        _pair_head_kernel,
        out_shape=jax.ShapeDtypeStruct((B, n_pad, n_pad), f32),
        grid_spec=pltpu.PrefetchScalarGridSpec(
            num_scalar_prefetch=0,
            grid=(gi, B, gj),          # long i-axis first -> even v7x TC split
            in_specs=[
                pl.BlockSpec((1, ti, D), lambda i, b, j: (b, i, 0)),   # fi centered
                pl.BlockSpec((1, D, tj), lambda i, b, j: (b, 0, j)),   # fj centered^T
                pl.BlockSpec((1, ti, D), lambda i, b, j: (b, i, 0)),   # A_i
                pl.BlockSpec((1, D, tj), lambda i, b, j: (b, 0, j)),   # A_j^T
                pl.BlockSpec((1, ti, 1), lambda i, b, j: (b, i, 0)),   # s_i col
                pl.BlockSpec((1, 1, tj), lambda i, b, j: (b, 0, j)),   # s_j row
                pl.BlockSpec((1, ti, 1), lambda i, b, j: (b, i, 0)),   # ddg_i col
                pl.BlockSpec((1, 1, tj), lambda i, b, j: (b, 0, j)),   # ddg_j + b_eff
                pl.BlockSpec((D, 1), lambda i, b, j: (0, 0)),          # b1'
                pl.BlockSpec((D, 1), lambda i, b, j: (0, 0)),          # w_eff
            ],
            out_specs=pl.BlockSpec((1, ti, tj), lambda i, b, j: (b, i, j)),
            scratch_shapes=[pltpu.VMEM((ti, tj), f32)],                # inv std
        ),
        compiler_params=pltpu.CompilerParams(
            dimension_semantics=("parallel", "parallel", "parallel"),
            vmem_limit_bytes=32 * 1024 * 1024,
        ),
        cost_estimate=pl.CostEstimate(
            flops=flops, transcendentals=B * n_pad * n_pad,
            bytes_accessed=bytes_accessed),
    )(fc3, fct, a3, at, s_col, s_row, ddg_col, ddg_row, b1_col, w_col)

    mut2_ddg = out[:, :N, :N].reshape(B, L, A, L, A)
    return {"mut2_ddg": mut2_ddg}


if __name__ == "__main__":
    # Small deterministic shapes: batch=2, seq(L)=6, amino types(A)=20, head_dim=32.
    batch, L, A, head_dim = 2, 6, 20, 32

    key = jax.random.PRNGKey(0)
    keys = jax.random.split(key, 12)
    bound = 1.0 / math.sqrt(head_dim)

    def lin_init(k, shape):
        return jax.random.uniform(k, shape, jnp.float32, minval=-bound, maxval=bound)

    params = {
        # multi_adapter FFN
        "aw1": lin_init(keys[0], (head_dim, head_dim)),
        "ab1": lin_init(keys[1], (1, head_dim)),
        "aw2": lin_init(keys[2], (head_dim, head_dim)),
        "ab2": lin_init(keys[3], (1, head_dim)),
        # head: LayerNorm -> FFN -> Linear(D, 1)
        "ln_g": jnp.ones((1, head_dim), jnp.float32),
        "ln_b": jnp.zeros((1, head_dim), jnp.float32),
        "hw1": lin_init(keys[4], (head_dim, head_dim)),
        "hb1": lin_init(keys[5], (1, head_dim)),
        "hw2": lin_init(keys[6], (head_dim, head_dim)),
        "hb2": lin_init(keys[7], (1, head_dim)),
        "w_head": lin_init(keys[8], (1, head_dim)),
        "b_head": lin_init(keys[9], (1, 1)),
    }

    mut1_feat = jax.random.normal(keys[10], (batch, L, A, head_dim), jnp.float32)
    mut1_ddg = jax.random.normal(keys[11], (batch, L, A), jnp.float32)

    result = epistatic_multi_decoder_forward(mut1_feat, mut1_ddg, params)
    jax.block_until_ready(result["mut2_ddg"])
    assert result["mut2_ddg"].shape == (batch, L, A, L, A)

    # Pure-JAX reference (same math as the PyTorch forward, inference path).
    hp = jax.lax.Precision.HIGHEST

    def linear(x, w, b):
        return jnp.dot(x, w, precision=hp) + b

    x2d = mut1_feat.reshape(-1, head_dim)
    feat_ref = linear(jnp.maximum(linear(x2d, params["aw1"], params["ab1"]), 0.0),
                      params["aw2"], params["ab2"]).reshape(batch, L, A, head_dim)
    pair = feat_ref[:, None, None, :, :, :] + feat_ref[:, :, :, None, None, :]
    mu = pair.mean(-1, keepdims=True)
    var = ((pair - mu) ** 2).mean(-1, keepdims=True)
    ln = (pair - mu) * jax.lax.rsqrt(var + _LN_EPS) * params["ln_g"][0] + params["ln_b"][0]
    hh = jnp.maximum(jnp.dot(ln, params["hw1"], precision=hp) + params["hb1"][0], 0.0)
    hh = jnp.dot(hh, params["hw2"], precision=hp) + params["hb2"][0]
    ref = jnp.sum(hh * params["w_head"][0], axis=-1) + params["b_head"][0, 0]
    ref = ref + mut1_ddg[:, None, None, :, :] + mut1_ddg[:, :, :, None, None]

    max_err = float(jnp.max(jnp.abs(result["mut2_ddg"] - ref)))
    assert jnp.allclose(result["mut2_ddg"], ref, atol=2e-3, rtol=2e-3), max_err

    print("KERNEL_OK")
</pallas_src>

<mosaic_0001>
module attributes {stable_mosaic.version = 11 : i64} {
  func.func @_pair_head_kernel(%arg0: i32, %arg1: i32, %arg2: i32, %arg3: memref<1x128x32xf32, #tpu.memory_space<vmem>>, %arg4: memref<1x32x256xf32, #tpu.memory_space<vmem>>, %arg5: memref<1x128x32xf32, #tpu.memory_space<vmem>>, %arg6: memref<1x32x256xf32, #tpu.memory_space<vmem>>, %arg7: memref<1x128x1xf32, #tpu.memory_space<vmem>>, %arg8: memref<1x1x256xf32, #tpu.memory_space<vmem>>, %arg9: memref<1x128x1xf32, #tpu.memory_space<vmem>>, %arg10: memref<1x1x256xf32, #tpu.memory_space<vmem>>, %arg11: memref<32x1xf32, #tpu.memory_space<vmem>>, %arg12: memref<32x1xf32, #tpu.memory_space<vmem>>, %arg13: memref<1x128x256xf32, #tpu.memory_space<vmem>>, %arg14: memref<128x256xf32, #tpu.memory_space<vmem>>) attributes {dimension_semantics = [#tpu.dimension_semantics<parallel>, #tpu.dimension_semantics<parallel>, #tpu.dimension_semantics<parallel>], iteration_bounds = array<i64: 2, 2, 1>, scalar_prefetch = 0 : i64, scratch_operands = 1 : i64, tpu.core_type = #tpu.core_type<tc>, window_params = [{transform_indices = @transform_0, window_bounds = array<i64: 1, 128, 32>}, {transform_indices = @transform_1, window_bounds = array<i64: 1, 32, 256>}, {transform_indices = @transform_2, window_bounds = array<i64: 1, 128, 32>}, {transform_indices = @transform_3, window_bounds = array<i64: 1, 32, 256>}, {transform_indices = @transform_4, window_bounds = array<i64: 1, 128, 1>}, {transform_indices = @transform_5, window_bounds = array<i64: 1, 1, 256>}, {transform_indices = @transform_6, window_bounds = array<i64: 1, 128, 1>}, {transform_indices = @transform_7, window_bounds = array<i64: 1, 1, 256>}, {pipeline_mode = #tpu.pipeline_mode<synchronous>, transform_indices = @transform_8, window_bounds = array<i64: 32, 1>}, {pipeline_mode = #tpu.pipeline_mode<synchronous>, transform_indices = @transform_9, window_bounds = array<i64: 32, 1>}, {transform_indices = @transform_10, window_bounds = array<i64: 1, 128, 256>}]} {
    %c0 = arith.constant 0 : index
    %c0_0 = arith.constant 0 : index
    %c0_1 = arith.constant 0 : index
    %0 = vector.load %arg3[%c0, %c0_0, %c0_1] : memref<1x128x32xf32, #tpu.memory_space<vmem>>, vector<1x128x32xf32>
    %1 = vector.shape_cast %0 : vector<1x128x32xf32> to vector<128x32xf32>
    %c0_2 = arith.constant 0 : index
    %c0_3 = arith.constant 0 : index
    %c0_4 = arith.constant 0 : index
    %2 = vector.load %arg4[%c0_2, %c0_3, %c0_4] : memref<1x32x256xf32, #tpu.memory_space<vmem>>, vector<1x32x256xf32>
    %3 = vector.shape_cast %2 : vector<1x32x256xf32> to vector<32x256xf32>
    %cst = arith.constant dense<0.000000e+00> : vector<128x256xf32>
    %4 = tpu.matmul %1, %3, %cst {dimension_numbers = #tpu.dot_dimension_numbers<[1], [0], [0], [1], [0, 0, 1, 1], [], []>} : vector<128x32xf32>, vector<32x256xf32>, vector<128x256xf32> -> vector<128x256xf32>
    %c0_5 = arith.constant 0 : index
    %c0_6 = arith.constant 0 : index
    %c0_7 = arith.constant 0 : index
    %5 = vector.load %arg7[%c0_5, %c0_6, %c0_7] : memref<1x128x1xf32, #tpu.memory_space<vmem>>, vector<1x128x1xf32>
    %6 = vector.shape_cast %5 : vector<1x128x1xf32> to vector<128x1xf32>
    %c0_8 = arith.constant 0 : index
    %c0_9 = arith.constant 0 : index
    %c0_10 = arith.constant 0 : index
    %7 = vector.load %arg8[%c0_8, %c0_9, %c0_10] : memref<1x1x256xf32, #tpu.memory_space<vmem>>, vector<1x1x256xf32>
    %8 = vector.shape_cast %7 : vector<1x1x256xf32> to vector<1x256xf32>
    %9 = vector.broadcast %6 : vector<128x1xf32> to vector<128x256xf32>
    %10 = vector.broadcast %8 : vector<1x256xf32> to vector<128x256xf32>
    %11 = arith.addf %9, %10 : vector<128x256xf32>
    %cst_11 = arith.constant 6.250000e-02 : f32
    %12 = vector.broadcast %cst_11 : f32 to vector<128x256xf32>
    %13 = arith.mulf %12, %4 : vector<128x256xf32>
    %14 = arith.addf %11, %13 : vector<128x256xf32>
    %cst_12 = arith.constant 9.99999974E-6 : f32
    %15 = vector.broadcast %cst_12 : f32 to vector<128x256xf32>
    %16 = arith.addf %14, %15 : vector<128x256xf32>
    %17 = math.rsqrt %16 : vector<128x256xf32>
    %c0_13 = arith.constant 0 : index
    %c0_14 = arith.constant 0 : index
    %18 = vector.load %arg14[%c0_13, %c0_14] : memref<128x256xf32, #tpu.memory_space<vmem>>, vector<128x256xf32>
    tpu.vector_store %arg14[%c0_13, %c0_14], %17 {strides = array<i32>} : memref<128x256xf32, #tpu.memory_space<vmem>>, vector<128x256xf32>,
    %c0_15 = arith.constant 0 : index
    %c0_16 = arith.constant 0 : index
    %c0_17 = arith.constant 0 : index
    %19 = vector.load %arg6[%c0_15, %c0_16, %c0_17] : memref<1x32x256xf32, #tpu.memory_space<vmem>>, vector<1x32x256xf32>
    %20 = vector.shape_cast %19 : vector<1x32x256xf32> to vector<32x256xf32>
    %c0_18 = arith.constant 0 : index
    %c0_19 = arith.constant 0 : index
    %21 = vector.load %arg11[%c0_18, %c0_19] : memref<32x1xf32, #tpu.memory_space<vmem>>, vector<32x1xf32>
    %c0_20 = arith.constant 0 : index
    %c0_21 = arith.constant 0 : index
    %22 = vector.load %arg12[%c0_20, %c0_21] : memref<32x1xf32, #tpu.memory_space<vmem>>, vector<32x1xf32>
    %c0_22 = arith.constant 0 : index
    %c0_23 = arith.constant 0 : index
    %c0_24 = arith.constant 0 : index
    %23 = vector.load %arg10[%c0_22, %c0_23, %c0_24] : memref<1x1x256xf32, #tpu.memory_space<vmem>>, vector<1x1x256xf32>
    %24 = vector.shape_cast %23 : vector<1x1x256xf32> to vector<1x256xf32>
    %c0_i32 = arith.constant 0 : i32
    %c16_i32 = arith.constant 16 : i32
    %25 = arith.addi %c0_i32, %c16_i32 : i32
    %c1_i32 = arith.constant 1 : i32
    scf.for %arg15 = %c0_i32 to %25 step %c1_i32  : i32 {
      %c8_i32 = arith.constant 8 : i32
      %26 = arith.muli %arg15, %c8_i32 : i32
      %27 = tpu.assume_multiple %26, 8 : i32
      %28 = arith.index_cast %27 : i32 to index
      %c0_26 = arith.constant 0 : index
      %29 = vector.load %arg14[%28, %c0_26] : memref<128x256xf32, #tpu.memory_space<vmem>>, vector<8x256xf32>
      %c0_27 = arith.constant 0 : index
      %30 = arith.index_cast %27 : i32 to index
      %c0_28 = arith.constant 0 : index
      %31 = vector.load %arg5[%c0_27, %30, %c0_28] : memref<1x128x32xf32, #tpu.memory_space<vmem>>, vector<1x8x32xf32>
      %32 = vector.shape_cast %31 : vector<1x8x32xf32> to vector<8x32xf32>
      %33 = vector.shape_cast %29 : vector<8x256xf32> to vector<8x1x256xf32>
      %34 = vector.shape_cast %32 : vector<8x32xf32> to vector<8x32x1xf32>
      %35 = vector.shape_cast %20 : vector<32x256xf32> to vector<1x32x256xf32>
      %36 = vector.broadcast %34 : vector<8x32x1xf32> to vector<8x32x256xf32>
      %37 = vector.broadcast %35 : vector<1x32x256xf32> to vector<8x32x256xf32>
      %38 = arith.addf %36, %37 : vector<8x32x256xf32>
      %39 = vector.broadcast %33 : vector<8x1x256xf32> to vector<8x32x256xf32>
      %40 = arith.mulf %39, %38 : vector<8x32x256xf32>
      %41 = vector.shape_cast %21 : vector<32x1xf32> to vector<1x32x1xf32>
      %42 = vector.broadcast %41 : vector<1x32x1xf32> to vector<8x32x256xf32>
      %43 = arith.addf %40, %42 : vector<8x32x256xf32>
      %cst_29 = arith.constant 0.000000e+00 : f32
      %44 = vector.broadcast %cst_29 : f32 to vector<8x32x256xf32>
      %45 = arith.maximumf %43, %44 : vector<8x32x256xf32>
      %46 = vector.shape_cast %22 : vector<32x1xf32> to vector<1x32x1xf32>
      %47 = vector.broadcast %46 : vector<1x32x1xf32> to vector<8x32x256xf32>
      %48 = arith.mulf %45, %47 : vector<8x32x256xf32>
      %cst_30 = arith.constant dense<0.000000e+00> : vector<8x256xf32>
      %49 = vector.multi_reduction <add>, %48, %cst_30 [1] : vector<8x32x256xf32> to vector<8x256xf32>
      %c0_31 = arith.constant 0 : index
      %50 = arith.index_cast %27 : i32 to index
      %c0_32 = arith.constant 0 : index
      %51 = vector.load %arg9[%c0_31, %50, %c0_32] : memref<1x128x1xf32, #tpu.memory_space<vmem>>, vector<1x8x1xf32>
      %52 = vector.shape_cast %51 : vector<1x8x1xf32> to vector<8x1xf32>
      %53 = vector.broadcast %52 : vector<8x1xf32> to vector<8x256xf32>
      %54 = arith.addf %49, %53 : vector<8x256xf32>
      %55 = vector.broadcast %24 : vector<1x256xf32> to vector<8x256xf32>
      %56 = arith.addf %54, %55 : vector<8x256xf32>
      %c0_33 = arith.constant 0 : index
      %57 = arith.index_cast %27 : i32 to index
      %c0_34 = arith.constant 0 : index
      %58 = vector.load %arg13[%c0_33, %57, %c0_34] : memref<1x128x256xf32, #tpu.memory_space<vmem>>, vector<1x8x256xf32>
      %59 = vector.shape_cast %58 : vector<1x8x256xf32> to vector<8x256xf32>
      %60 = vector.shape_cast %56 : vector<8x256xf32> to vector<1x8x256xf32>
      tpu.vector_store %arg13[%c0_33, %57, %c0_34], %60 {strides = array<i32>} : memref<1x128x256xf32, #tpu.memory_space<vmem>>, vector<1x8x256xf32>,
    }
    %c16_i32_25 = arith.constant 16 : i32
    return
  }
  func.func @transform_0(%arg0: i32, %arg1: i32, %arg2: i32) -> (i32, i32, i32) {
    %c0_i32 = arith.constant 0 : i32
    %c0_i32_0 = arith.constant 0 : i32
    return %arg1, %arg0, %c0_i32 : i32, i32, i32
  }
  func.func @transform_1(%arg0: i32, %arg1: i32, %arg2: i32) -> (i32, i32, i32) {
    %c0_i32 = arith.constant 0 : i32
    %c0_i32_0 = arith.constant 0 : i32
    return %arg1, %c0_i32, %arg2 : i32, i32, i32
  }
  func.func @transform_2(%arg0: i32, %arg1: i32, %arg2: i32) -> (i32, i32, i32) {
    %c0_i32 = arith.constant 0 : i32
    %c0_i32_0 = arith.constant 0 : i32
    return %arg1, %arg0, %c0_i32 : i32, i32, i32
  }
  func.func @transform_3(%arg0: i32, %arg1: i32, %arg2: i32) -> (i32, i32, i32) {
    %c0_i32 = arith.constant 0 : i32
    %c0_i32_0 = arith.constant 0 : i32
    return %arg1, %c0_i32, %arg2 : i32, i32, i32
  }
  func.func @transform_4(%arg0: i32, %arg1: i32, %arg2: i32) -> (i32, i32, i32) {
    %c0_i32 = arith.constant 0 : i32
    %c0_i32_0 = arith.constant 0 : i32
    return %arg1, %arg0, %c0_i32 : i32, i32, i32
  }
  func.func @transform_5(%arg0: i32, %arg1: i32, %arg2: i32) -> (i32, i32, i32) {
    %c0_i32 = arith.constant 0 : i32
    %c0_i32_0 = arith.constant 0 : i32
    return %arg1, %c0_i32, %arg2 : i32, i32, i32
  }
  func.func @transform_6(%arg0: i32, %arg1: i32, %arg2: i32) -> (i32, i32, i32) {
    %c0_i32 = arith.constant 0 : i32
    %c0_i32_0 = arith.constant 0 : i32
    return %arg1, %arg0, %c0_i32 : i32, i32, i32
  }
  func.func @transform_7(%arg0: i32, %arg1: i32, %arg2: i32) -> (i32, i32, i32) {
    %c0_i32 = arith.constant 0 : i32
    %c0_i32_0 = arith.constant 0 : i32
    return %arg1, %c0_i32, %arg2 : i32, i32, i32
  }
  func.func @transform_8(%arg0: i32, %arg1: i32, %arg2: i32) -> (i32, i32) {
    %c0_i32 = arith.constant 0 : i32
    %c0_i32_0 = arith.constant 0 : i32
    %c0_i32_1 = arith.constant 0 : i32
    return %c0_i32, %c0_i32_0 : i32, i32
  }
  func.func @transform_9(%arg0: i32, %arg1: i32, %arg2: i32) -> (i32, i32) {
    %c0_i32 = arith.constant 0 : i32
    %c0_i32_0 = arith.constant 0 : i32
    %c0_i32_1 = arith.constant 0 : i32
    return %c0_i32, %c0_i32_0 : i32, i32
  }
  func.func @transform_10(%arg0: i32, %arg1: i32, %arg2: i32) -> (i32, i32, i32) {
    %c0_i32 = arith.constant 0 : i32
    return %arg1, %arg0, %arg2 : i32, i32, i32
  }
}

</mosaic_0001>

<llo_original>
// kernel: tpu_custom_call.1
$region0: #{tpu_custom_call.1}
  #allocation0 [shape = 'u32[]', space=smem, size = 0x4, offset = 0x4, fixed_abs, tag = 'smem constant byte address 0x4 - core index']
  #allocation1 [shape = 'u32[144,128]{1,0:T(1,128)}', space=vmem, size = 0x12000, scoped, tag = 'internal scratch']
  #allocation2 [shape = 'f32[128,256]{1,0:T(8,128)}', space=vmem, size = 0x20000, scoped, tag = 'scratch operand']
  %s0 = inlined_call_operand.vmem [shape: f32[2,256,32], index: 0, kind: input, shape index: {}]
  %s1 = inlined_call_operand.vmem [shape: f32[2,32,256], index: 1, kind: input, shape index: {}]
  %s2 = inlined_call_operand.vmem [shape: f32[2,256,32], index: 2, kind: input, shape index: {}]
  %s3 = inlined_call_operand.vmem [shape: f32[2,32,256], index: 3, kind: input, shape index: {}]
  %s4 = inlined_call_operand.vmem [shape: f32[2,256,1], index: 4, kind: input, shape index: {}]
  %s5 = inlined_call_operand.vmem [shape: f32[2,1,256], index: 5, kind: input, shape index: {}]
  %s6 = inlined_call_operand.vmem [shape: f32[2,256,1], index: 6, kind: input, shape index: {}]
  %s7 = inlined_call_operand.vmem [shape: f32[2,1,256], index: 7, kind: input, shape index: {}]
  %s8 = inlined_call_operand.vmem [shape: f32[32,1], index: 8, kind: input, shape index: {}]
  %s9 = inlined_call_operand.vmem [shape: f32[32,1], index: 9, kind: input, shape index: {}]
  %s10 = inlined_call_operand.hbm [shape: f32[2,256,256], index: 10, kind: output, shape index: {}]
  %s11 = sld [smem:[#allocation0]]
  $region80: #{tpu_custom_call.1} parent=0
    _
  %s13 = ssub.s32 1, %s11
  %s14 = scalar_select 0, %s13, %s11
  $region1: #{tpu_custom_call.1} parent=0
    #allocation3 [shape = 'u8[262144]{0}', space=vmem, size = 0x40000, scoped, tag = 'output window, operand 0']
    #allocation4 [shape = 's32[2]{0}', space=sflag, size = 0x8, scoped, tag = 'scoped memory for tpu_custom_call.1']
    %15 = vsyncpa [#allocation4], 0
    %s16 = scalar_lea.sflag [#allocation4], 1
    %17 = vsyncpa %s16, 0
    loop: start=0, step=1, limit=6
    $region2: #{tpu_custom_call.1} parent=1 // loop_pre_header
      _
    $region3: #{tpu_custom_call.1} parent=1 // loop_header
      %s19 = sphi 0, %s23
      %p20 = scmp.ge.s32.totalorder %s19, 6
      %s26 = sphi 0, %s45
      %s27 = sphi 0, %s41
      %s28 = sphi 0, %s37
      %s29 = sphi 0, %s26
      %s30 = sphi 0, %s27
      %s31 = sphi 0, %s28
      %s32 = sphi 0, %s29
      %s33 = sphi 0, %s30
      %s34 = sphi 0, %s31
      %s50 = sphi 0, %s52
      %s53 = sphi 0, %s50
      %s54 = sphi 0, %s53
      %s70 = sphi 0, %s54
      %s78 = sphi 0, %s80
      %s81 = sphi 0, %s78
      %s82 = sphi 0, %s81
      %s98 = sphi 0, %s82
      %s106 = sphi 0, %s108
      %s109 = sphi 0, %s106
      %s110 = sphi 0, %s109
      %s126 = sphi 0, %s110
      %s134 = sphi 0, %s136
      %s137 = sphi 0, %s134
      %s138 = sphi 0, %s137
      %s154 = sphi 0, %s138
      %s162 = sphi 0, %s164
      %s165 = sphi 0, %s162
      %s166 = sphi 0, %s165
      %s182 = sphi 0, %s166
      %s190 = sphi 0, %s192
      %s193 = sphi 0, %s190
      %s194 = sphi 0, %s193
      %s210 = sphi 0, %s194
      %s218 = sphi 0, %s220
      %s221 = sphi 0, %s218
      %s222 = sphi 0, %s221
      %s238 = sphi 0, %s222
      %s246 = sphi 0, %s248
      %s249 = sphi 0, %s246
      %s250 = sphi 0, %s249
      %s266 = sphi 0, %s250
      %s270 = sphi 0, %s270
      %s272 = sphi 0, %s270
      %s273 = sphi 0, %s272
      %s287 = sphi 0, %s273
      %s291 = sphi 0, %s291
      %s293 = sphi 0, %s291
      %s294 = sphi 0, %s293
      %s308 = sphi 0, %s294
      %s318 = sphi 0, %s320
      %s321 = sphi 0, %s318
      %s322 = sphi 0, %s321
      %s338 = sphi 0, %s322
    $region4: #{tpu_custom_call.1} parent=1 // loop_header_branch
      %22 = sbr.rel (%p20) target = $region8
    $region5: #{tpu_custom_call.1} parent=1 // loop_body
      %s24 = ssub.s32 %s19, 1
      %s25 = ssub.s32 %s19, 2
      %s35 = sadd.s32 1, %s28
      %p36 = scmp.ge.s32.totalorder %s35, 1
      %s37 = scalar_select %p36, 0, %s35
      %s38 = sadd.s32 1, %s27
      %s39 = scalar_select %p36, %s38, %s27
      %p40 = scmp.ge.s32.totalorder %s39, 2
      %s41 = scalar_select %p40, 0, %s39
      %s42 = sadd.s32 1, %s26
      %s43 = scalar_select %p40, %s42, %s26
      %p44 = scmp.ge.s32.totalorder %s43, 2
      %s45 = scalar_select %p44, 0, %s43
      %s46 = ssub.s32 %s27, %s41
      %s47 = ssub.s32 %s26, %s45
      %s48 = sor.u32 %s46, %s47
      %p49 = scmp.eq.s32.totalorder %s48, 0
      %s51 = sadd.s32 %s50, 1
      %s52 = scalar_select %p49, %s50, %s51
      %p55 = pneg %p49
      %p56 = scmp.eq.s32.totalorder %s19, 3
      %p57 = por %p55, %p56
      %p58 = scmp.ne.s32.totalorder %s50, %s53
      %p59 = scmp.eq.s32.totalorder %s19, 0
      %p60 = por %p58, %p59
      %p61 = scmp.ne.s32.totalorder %s50, %s53
      %p62 = scmp.eq.s32.totalorder %s24, 3
      %p63 = por %p61, %p62
      %p64 = scmp.ne.s32.totalorder %s53, %s54
      %p65 = scmp.eq.s32.totalorder %s24, 0
      %p66 = por %p64, %p65
      %p67 = scmp.ne.s32.totalorder %s53, %s54
      %p68 = scmp.eq.s32.totalorder %s25, 3
      %p69 = por %p67, %p68
      %p71 = scmp.ne.s32.totalorder %s54, %s70
      %p72 = scmp.eq.s32.totalorder %s25, 0
      %p73 = por %p71, %p72
      %s74 = ssub.s32 %s27, %s41
      %s75 = ssub.s32 %s28, %s37
      %s76 = sor.u32 %s74, %s75
      %p77 = scmp.eq.s32.totalorder %s76, 0
      %s79 = sadd.s32 %s78, 1
      %s80 = scalar_select %p77, %s78, %s79
      %p83 = pneg %p77
      %p84 = scmp.eq.s32.totalorder %s19, 3
      %p85 = por %p83, %p84
      %p86 = scmp.ne.s32.totalorder %s78, %s81
      %p87 = scmp.eq.s32.totalorder %s19, 0
      %p88 = por %p86, %p87
      %p89 = scmp.ne.s32.totalorder %s78, %s81
      %p90 = scmp.eq.s32.totalorder %s24, 3
      %p91 = por %p89, %p90
      %p92 = scmp.ne.s32.totalorder %s81, %s82
      %p93 = scmp.eq.s32.totalorder %s24, 0
      %p94 = por %p92, %p93
      %p95 = scmp.ne.s32.totalorder %s81, %s82
      %p96 = scmp.eq.s32.totalorder %s25, 3
      %p97 = por %p95, %p96
      %p99 = scmp.ne.s32.totalorder %s82, %s98
      %p100 = scmp.eq.s32.totalorder %s25, 0
      %p101 = por %p99, %p100
      %s102 = ssub.s32 %s27, %s41
      %s103 = ssub.s32 %s26, %s45
      %s104 = sor.u32 %s102, %s103
      %p105 = scmp.eq.s32.totalorder %s104, 0
      %s107 = sadd.s32 %s106, 1
      %s108 = scalar_select %p105, %s106, %s107
      %p111 = pneg %p105
      %p112 = scmp.eq.s32.totalorder %s19, 3
      %p113 = por %p111, %p112
      %p114 = scmp.ne.s32.totalorder %s106, %s109
      %p115 = scmp.eq.s32.totalorder %s19, 0
      %p116 = por %p114, %p115
      %p117 = scmp.ne.s32.totalorder %s106, %s109
      %p118 = scmp.eq.s32.totalorder %s24, 3
      %p119 = por %p117, %p118
      %p120 = scmp.ne.s32.totalorder %s109, %s110
      %p121 = scmp.eq.s32.totalorder %s24, 0
      %p122 = por %p120, %p121
      %p123 = scmp.ne.s32.totalorder %s109, %s110
      %p124 = scmp.eq.s32.totalorder %s25, 3
      %p125 = por %p123, %p124
      %p127 = scmp.ne.s32.totalorder %s110, %s126
      %p128 = scmp.eq.s32.totalorder %s25, 0
      %p129 = por %p127, %p128
      %s130 = ssub.s32 %s27, %s41
      %s131 = ssub.s32 %s28, %s37
      %s132 = sor.u32 %s130, %s131
      %p133 = scmp.eq.s32.totalorder %s132, 0
      %s135 = sadd.s32 %s134, 1
      %s136 = scalar_select %p133, %s134, %s135
      %p139 = pneg %p133
      %p140 = scmp.eq.s32.totalorder %s19, 3
      %p141 = por %p139, %p140
      %p142 = scmp.ne.s32.totalorder %s134, %s137
      %p143 = scmp.eq.s32.totalorder %s19, 0
      %p144 = por %p142, %p143
      %p145 = scmp.ne.s32.totalorder %s134, %s137
      %p146 = scmp.eq.s32.totalorder %s24, 3
      %p147 = por %p145, %p146
      %p148 = scmp.ne.s32.totalorder %s137, %s138
      %p149 = scmp.eq.s32.totalorder %s24, 0
      %p150 = por %p148, %p149
      %p151 = scmp.ne.s32.totalorder %s137, %s138
      %p152 = scmp.eq.s32.totalorder %s25, 3
      %p153 = por %p151, %p152
      %p155 = scmp.ne.s32.totalorder %s138, %s154
      %p156 = scmp.eq.s32.totalorder %s25, 0
      %p157 = por %p155, %p156
      %s158 = ssub.s32 %s27, %s41
      %s159 = ssub.s32 %s26, %s45
      %s160 = sor.u32 %s158, %s159
      %p161 = scmp.eq.s32.totalorder %s160, 0
      %s163 = sadd.s32 %s162, 1
      %s164 = scalar_select %p161, %s162, %s163
      %p167 = pneg %p161
      %p168 = scmp.eq.s32.totalorder %s19, 3
      %p169 = por %p167, %p168
      %p170 = scmp.ne.s32.totalorder %s162, %s165
      %p171 = scmp.eq.s32.totalorder %s19, 0
      %p172 = por %p170, %p171
      %p173 = scmp.ne.s32.totalorder %s162, %s165
      %p174 = scmp.eq.s32.totalorder %s24, 3
      %p175 = por %p173, %p174
      %p176 = scmp.ne.s32.totalorder %s165, %s166
      %p177 = scmp.eq.s32.totalorder %s24, 0
      %p178 = por %p176, %p177
      %p179 = scmp.ne.s32.totalorder %s165, %s166
      %p180 = scmp.eq.s32.totalorder %s25, 3
      %p181 = por %p179, %p180
      %p183 = scmp.ne.s32.totalorder %s166, %s182
      %p184 = scmp.eq.s32.totalorder %s25, 0
      %p185 = por %p183, %p184
      %s186 = ssub.s32 %s27, %s41
      %s187 = ssub.s32 %s28, %s37
      %s188 = sor.u32 %s186, %s187
      %p189 = scmp.eq.s32.totalorder %s188, 0
      %s191 = sadd.s32 %s190, 1
      %s192 = scalar_select %p189, %s190, %s191
      %p195 = pneg %p189
      %p196 = scmp.eq.s32.totalorder %s19, 3
      %p197 = por %p195, %p196
      %p198 = scmp.ne.s32.totalorder %s190, %s193
      %p199 = scmp.eq.s32.totalorder %s19, 0
      %p200 = por %p198, %p199
      %p201 = scmp.ne.s32.totalorder %s190, %s193
      %p202 = scmp.eq.s32.totalorder %s24, 3
      %p203 = por %p201, %p202
      %p204 = scmp.ne.s32.totalorder %s193, %s194
      %p205 = scmp.eq.s32.totalorder %s24, 0
      %p206 = por %p204, %p205
      %p207 = scmp.ne.s32.totalorder %s193, %s194
      %p208 = scmp.eq.s32.totalorder %s25, 3
      %p209 = por %p207, %p208
      %p211 = scmp.ne.s32.totalorder %s194, %s210
      %p212 = scmp.eq.s32.totalorder %s25, 0
      %p213 = por %p211, %p212
      %s214 = ssub.s32 %s27, %s41
      %s215 = ssub.s32 %s26, %s45
      %s216 = sor.u32 %s214, %s215
      %p217 = scmp.eq.s32.totalorder %s216, 0
      %s219 = sadd.s32 %s218, 1
      %s220 = scalar_select %p217, %s218, %s219
      %p223 = pneg %p217
      %p224 = scmp.eq.s32.totalorder %s19, 3
      %p225 = por %p223, %p224
      %p226 = scmp.ne.s32.totalorder %s218, %s221
      %p227 = scmp.eq.s32.totalorder %s19, 0
      %p228 = por %p226, %p227
      %p229 = scmp.ne.s32.totalorder %s218, %s221
      %p230 = scmp.eq.s32.totalorder %s24, 3
      %p231 = por %p229, %p230
      %p232 = scmp.ne.s32.totalorder %s221, %s222
      %p233 = scmp.eq.s32.totalorder %s24, 0
      %p234 = por %p232, %p233
      %p235 = scmp.ne.s32.totalorder %s221, %s222
      %p236 = scmp.eq.s32.totalorder %s25, 3
      %p237 = por %p235, %p236
      %p239 = scmp.ne.s32.totalorder %s222, %s238
      %p240 = scmp.eq.s32.totalorder %s25, 0
      %p241 = por %p239, %p240
      %s242 = ssub.s32 %s27, %s41
      %s243 = ssub.s32 %s28, %s37
      %s244 = sor.u32 %s242, %s243
      %p245 = scmp.eq.s32.totalorder %s244, 0
      %s247 = sadd.s32 %s246, 1
      %s248 = scalar_select %p245, %s246, %s247
      %p251 = pneg %p245
      %p252 = scmp.eq.s32.totalorder %s19, 3
      %p253 = por %p251, %p252
      %p254 = scmp.ne.s32.totalorder %s246, %s249
      %p255 = scmp.eq.s32.totalorder %s19, 0
      %p256 = por %p254, %p255
      %p257 = scmp.ne.s32.totalorder %s246, %s249
      %p258 = scmp.eq.s32.totalorder %s24, 3
      %p259 = por %p257, %p258
      %p260 = scmp.ne.s32.totalorder %s249, %s250
      %p261 = scmp.eq.s32.totalorder %s24, 0
      %p262 = por %p260, %p261
      %p263 = scmp.ne.s32.totalorder %s249, %s250
      %p264 = scmp.eq.s32.totalorder %s25, 3
      %p265 = por %p263, %p264
      %p267 = scmp.ne.s32.totalorder %s250, %s266
      %p268 = scmp.eq.s32.totalorder %s25, 0
      %p269 = por %p267, %p268
      %s271 = sadd.s32 %s270, 1
      %p274 = scmp.eq.s32.totalorder %s19, 3
      %p275 = scmp.ne.s32.totalorder %s270, %s272
      %p276 = scmp.eq.s32.totalorder %s19, 0
      %p277 = por %p275, %p276
      %p278 = scmp.ne.s32.totalorder %s270, %s272
      %p279 = scmp.eq.s32.totalorder %s24, 3
      %p280 = por %p278, %p279
      %p281 = scmp.ne.s32.totalorder %s272, %s273
      %p282 = scmp.eq.s32.totalorder %s24, 0
      %p283 = por %p281, %p282
      %p284 = scmp.ne.s32.totalorder %s272, %s273
      %p285 = scmp.eq.s32.totalorder %s25, 3
      %p286 = por %p284, %p285
      %p288 = scmp.ne.s32.totalorder %s273, %s287
      %p289 = scmp.eq.s32.totalorder %s25, 0
      %p290 = por %p288, %p289
      %s292 = sadd.s32 %s291, 1
      %p295 = scmp.eq.s32.totalorder %s19, 3
      %p296 = scmp.ne.s32.totalorder %s291, %s293
      %p297 = scmp.eq.s32.totalorder %s19, 0
      %p298 = por %p296, %p297
      %p299 = scmp.ne.s32.totalorder %s291, %s293
      %p300 = scmp.eq.s32.totalorder %s24, 3
      %p301 = por %p299, %p300
      %p302 = scmp.ne.s32.totalorder %s293, %s294
      %p303 = scmp.eq.s32.totalorder %s24, 0
      %p304 = por %p302, %p303
      %p305 = scmp.ne.s32.totalorder %s293, %s294
      %p306 = scmp.eq.s32.totalorder %s25, 3
      %p307 = por %p305, %p306
      %p309 = scmp.ne.s32.totalorder %s294, %s308
      %p310 = scmp.eq.s32.totalorder %s25, 0
      %p311 = por %p309, %p310
      %s312 = ssub.s32 %s27, %s41
      %s313 = ssub.s32 %s26, %s45
      %s314 = sor.u32 %s312, %s313
      %s315 = ssub.s32 %s28, %s37
      %s316 = sor.u32 %s314, %s315
      %p317 = scmp.eq.s32.totalorder %s316, 0
      %s319 = sadd.s32 %s318, 1
      %s320 = scalar_select %p317, %s318, %s319
      %p323 = pneg %p317
      %p324 = scmp.eq.s32.totalorder %s19, 3
      %p325 = por %p323, %p324
      %p326 = scmp.ne.s32.totalorder %s318, %s321
      %p327 = scmp.eq.s32.totalorder %s19, 0
      %p328 = por %p326, %p327
      %p329 = scmp.ne.s32.totalorder %s318, %s321
      %p330 = scmp.eq.s32.totalorder %s24, 3
      %p331 = por %p329, %p330
      %p332 = scmp.ne.s32.totalorder %s321, %s322
      %p333 = scmp.eq.s32.totalorder %s24, 0
      %p334 = por %p332, %p333
      %p335 = scmp.ne.s32.totalorder %s321, %s322
      %p336 = scmp.eq.s32.totalorder %s25, 3
      %p337 = por %p335, %p336
      %p339 = scmp.ne.s32.totalorder %s322, %s338
      %p340 = scmp.eq.s32.totalorder %s25, 0
      %p341 = por %p339, %p340
      %p342 = scmp.le.s32.totalorder 1, %s19
      %p343 = scmp.lt.s32.totalorder %s19, 5
      %p344 = pnand %p342, %p343
      %p345 = pneg %p344
      // Predicated region
      $region9: #{tpu_custom_call.1} parent=5 // pred_check
        _
      $region10: #{tpu_custom_call.1} parent=5 // pred_check_branch
        %347 = sbr.rel (%p344) target = $region12
      $region11: #{tpu_custom_call.1} parent=5 // pred_region
        %s348 = ssub.s32 %s19, 1
        // Predicated region
        $region13: #{tpu_custom_call.1} parent=11 // pred_check
          %p349 = pneg %p283
        $region14: #{tpu_custom_call.1} parent=11 // pred_check_branch
          %351 = sbr.rel (%p349) target = $region16
        $region15: #{tpu_custom_call.1} parent=11 // pred_region
          _
        $region16: #{tpu_custom_call.1} parent=11 // pred_fallthru
          _
        // Predicated region
        $region17: #{tpu_custom_call.1} parent=11 // pred_check
          %p352 = pneg %p304
        $region18: #{tpu_custom_call.1} parent=11 // pred_check_branch
          %354 = sbr.rel (%p352) target = $region20
        $region19: #{tpu_custom_call.1} parent=11 // pred_region
          _
        $region20: #{tpu_custom_call.1} parent=11 // pred_fallthru
          _
      $region12: #{tpu_custom_call.1} parent=5 // pred_fallthru
        _
      %p355 = scmp.lt.s32.totalorder %s19, 4
      // Predicated region
      $region21: #{tpu_custom_call.1} parent=5 // pred_check
        %p356 = pneg %p355
      $region22: #{tpu_custom_call.1} parent=5 // pred_check_branch
        %358 = sbr.rel (%p356) target = $region24
      $region23: #{tpu_custom_call.1} parent=5 // pred_region
        // Predicated region
        $region25: #{tpu_custom_call.1} parent=23 // pred_check
          %p359 = pneg %p60
        $region26: #{tpu_custom_call.1} parent=23 // pred_check_branch
          %361 = sbr.rel (%p359) target = $region28
        $region27: #{tpu_custom_call.1} parent=23 // pred_region
          %s362 = smul.u32 16, %s26
          %p363 = scmp.lt.s32.totalorder %s27, 1
          %s364 = scalar_select %p363, %s27, 1
          %p365 = scmp.lt.s32.totalorder %s362, 31
          %s366 = scalar_select %p365, %s362, 31
          %s367 = smul.addr %s364, 32
          %s368 = sadd.s32 %s366, %s367
          %s369 = smul.addr %s368, 8
          %s370 = scalar_lea.vmem %s0, %s369
          %s371 = smul.u32 16, %s26
        $region28: #{tpu_custom_call.1} parent=23 // pred_fallthru
          _
        // Predicated region
        $region29: #{tpu_custom_call.1} parent=23 // pred_check
          %p372 = pneg %p88
        $region30: #{tpu_custom_call.1} parent=23 // pred_check_branch
          %374 = sbr.rel (%p372) target = $region32
        $region31: #{tpu_custom_call.1} parent=23 // pred_region
          %s375 = smul.u32 2, %s28
          %p376 = scmp.lt.s32.totalorder %s27, 1
          %s377 = scalar_select %p376, %s27, 1
          %p378 = scmp.lt.s32.totalorder %s375, 1
          %s379 = scalar_select %p378, %s375, 1
          %s380 = smul.addr %s377, 8
          %s381 = sadd.s32 %s379, %s380
          %s382 = smul.addr %s381, 8
          %s383 = scalar_lea.vmem %s1, %s382
          %s384 = smul.u32 2, %s28
        $region32: #{tpu_custom_call.1} parent=23 // pred_fallthru
          _
        // Predicated region
        $region33: #{tpu_custom_call.1} parent=23 // pred_check
          %p385 = pneg %p116
        $region34: #{tpu_custom_call.1} parent=23 // pred_check_branch
          %387 = sbr.rel (%p385) target = $region36
        $region35: #{tpu_custom_call.1} parent=23 // pred_region
          %s388 = smul.u32 16, %s26
          %p389 = scmp.lt.s32.totalorder %s27, 1
          %s390 = scalar_select %p389, %s27, 1
          %p391 = scmp.lt.s32.totalorder %s388, 31
          %s392 = scalar_select %p391, %s388, 31
          %s393 = smul.addr %s390, 32
          %s394 = sadd.s32 %s392, %s393
          %s395 = smul.addr %s394, 8
          %s396 = scalar_lea.vmem %s2, %s395
          %s397 = smul.u32 16, %s26
        $region36: #{tpu_custom_call.1} parent=23 // pred_fallthru
          _
        // Predicated region
        $region37: #{tpu_custom_call.1} parent=23 // pred_check
          %p398 = pneg %p144
        $region38: #{tpu_custom_call.1} parent=23 // pred_check_branch
          %400 = sbr.rel (%p398) target = $region40
        $region39: #{tpu_custom_call.1} parent=23 // pred_region
          %s401 = smul.u32 2, %s28
          %p402 = scmp.lt.s32.totalorder %s27, 1
          %s403 = scalar_select %p402, %s27, 1
          %p404 = scmp.lt.s32.totalorder %s401, 1
          %s405 = scalar_select %p404, %s401, 1
          %s406 = smul.addr %s403, 8
          %s407 = sadd.s32 %s405, %s406
          %s408 = smul.addr %s407, 8
          %s409 = scalar_lea.vmem %s3, %s408
          %s410 = smul.u32 2, %s28
        $region40: #{tpu_custom_call.1} parent=23 // pred_fallthru
          _
        // Predicated region
        $region41: #{tpu_custom_call.1} parent=23 // pred_check
          %p411 = pneg %p172
        $region42: #{tpu_custom_call.1} parent=23 // pred_check_branch
          %413 = sbr.rel (%p411) target = $region44
        $region43: #{tpu_custom_call.1} parent=23 // pred_region
          %s414 = smul.u32 16, %s26
          %p415 = scmp.lt.s32.totalorder %s27, 1
          %s416 = scalar_select %p415, %s27, 1
          %p417 = scmp.lt.s32.totalorder %s414, 31
          %s418 = scalar_select %p417, %s414, 31
          %s419 = smul.addr %s416, 32
          %s420 = sadd.s32 %s418, %s419
          %s421 = smul.addr %s420, 8
          %s422 = scalar_lea.vmem %s4, %s421
          %s423 = smul.u32 16, %s26
        $region44: #{tpu_custom_call.1} parent=23 // pred_fallthru
          _
        // Predicated region
        $region45: #{tpu_custom_call.1} parent=23 // pred_check
          %p424 = pneg %p200
        $region46: #{tpu_custom_call.1} parent=23 // pred_check_branch
          %426 = sbr.rel (%p424) target = $region48
        $region47: #{tpu_custom_call.1} parent=23 // pred_region
          %s427 = smul.u32 2, %s28
          %p428 = scmp.lt.s32.totalorder %s27, 1
          %s429 = scalar_select %p428, %s27, 1
          %p430 = scmp.lt.s32.totalorder %s427, 1
          %s431 = scalar_select %p430, %s427, 1
          %s432 = smul.addr %s429, 2
          %s433 = sadd.s32 %s431, %s432
          %s434 = scalar_lea.vmem %s5, %s433
          %s435 = smul.u32 2, %s28
        $region48: #{tpu_custom_call.1} parent=23 // pred_fallthru
          _
        // Predicated region
        $region49: #{tpu_custom_call.1} parent=23 // pred_check
          %p436 = pneg %p228
        $region50: #{tpu_custom_call.1} parent=23 // pred_check_branch
          %438 = sbr.rel (%p436) target = $region52
        $region51: #{tpu_custom_call.1} parent=23 // pred_region
          %s439 = smul.u32 16, %s26
          %p440 = scmp.lt.s32.totalorder %s27, 1
          %s441 = scalar_select %p440, %s27, 1
          %p442 = scmp.lt.s32.totalorder %s439, 31
          %s443 = scalar_select %p442, %s439, 31
          %s444 = smul.addr %s441, 32
          %s445 = sadd.s32 %s443, %s444
          %s446 = smul.addr %s445, 8
          %s447 = scalar_lea.vmem %s6, %s446
          %s448 = smul.u32 16, %s26
        $region52: #{tpu_custom_call.1} parent=23 // pred_fallthru
          _
        // Predicated region
        $region53: #{tpu_custom_call.1} parent=23 // pred_check
          %p449 = pneg %p256
        $region54: #{tpu_custom_call.1} parent=23 // pred_check_branch
          %451 = sbr.rel (%p449) target = $region56
        $region55: #{tpu_custom_call.1} parent=23 // pred_region
          %s452 = smul.u32 2, %s28
          %p453 = scmp.lt.s32.totalorder %s27, 1
          %s454 = scalar_select %p453, %s27, 1
          %p455 = scmp.lt.s32.totalorder %s452, 1
          %s456 = scalar_select %p455, %s452, 1
          %s457 = smul.addr %s454, 2
          %s458 = sadd.s32 %s456, %s457
          %s459 = scalar_lea.vmem %s7, %s458
          %s460 = smul.u32 2, %s28
        $region56: #{tpu_custom_call.1} parent=23 // pred_fallthru
          _
      $region24: #{tpu_custom_call.1} parent=5 // pred_fallthru
        _
      %p461 = scmp.le.s32.totalorder 1, %s19
      %p462 = scmp.lt.s32.totalorder %s19, 5
      %p463 = pnand %p461, %p462
      %p464 = pneg %p463
      // Predicated region
      $region57: #{tpu_custom_call.1} parent=5 // pred_check
        _
      $region58: #{tpu_custom_call.1} parent=5 // pred_check_branch
        %466 = sbr.rel (%p463) target = $region60
      $region59: #{tpu_custom_call.1} parent=5 // pred_region
        %s467 = ssub.s32 %s19, 1
        %s468 = smul.u32 16, %s29
        %p469 = scmp.lt.s32.totalorder %s30, 1
        %s470 = scalar_select %p469, %s30, 1
        %p471 = scmp.lt.s32.totalorder %s468, 31
        %s472 = scalar_select %p471, %s468, 31
        %s473 = smul.addr %s470, 32
        %s474 = sadd.s32 %s472, %s473
        %s475 = smul.addr %s474, 8
        %s476 = scalar_lea.vmem %s0, %s475
        %p477 = pneg %p66
        %p478 = pneg %p63
        %s479 = smul.u32 2, %s31
        %p480 = scmp.lt.s32.totalorder %s30, 1
        %s481 = scalar_select %p480, %s30, 1
        %p482 = scmp.lt.s32.totalorder %s479, 1
        %s483 = scalar_select %p482, %s479, 1
        %s484 = smul.addr %s481, 8
        %s485 = sadd.s32 %s483, %s484
        %s486 = smul.addr %s485, 8
        %s487 = scalar_lea.vmem %s1, %s486
        %p488 = pneg %p94
        %p489 = pneg %p91
        %s490 = smul.u32 16, %s29
        %p491 = scmp.lt.s32.totalorder %s30, 1
        %s492 = scalar_select %p491, %s30, 1
        %p493 = scmp.lt.s32.totalorder %s490, 31
        %s494 = scalar_select %p493, %s490, 31
        %s495 = smul.addr %s492, 32
        %s496 = sadd.s32 %s494, %s495
        %s497 = smul.addr %s496, 8
        %s498 = scalar_lea.vmem %s2, %s497
        %p499 = pneg %p122
        %p500 = pneg %p119
        %s501 = smul.u32 2, %s31
        %p502 = scmp.lt.s32.totalorder %s30, 1
        %s503 = scalar_select %p502, %s30, 1
        %p504 = scmp.lt.s32.totalorder %s501, 1
        %s505 = scalar_select %p504, %s501, 1
        %s506 = smul.addr %s503, 8
        %s507 = sadd.s32 %s505, %s506
        %s508 = smul.addr %s507, 8
        %s509 = scalar_lea.vmem %s3, %s508
        %p510 = pneg %p150
        %p511 = pneg %p147
        %s512 = smul.u32 16, %s29
        %p513 = scmp.lt.s32.totalorder %s30, 1
        %s514 = scalar_select %p513, %s30, 1
        %p515 = scmp.lt.s32.totalorder %s512, 31
        %s516 = scalar_select %p515, %s512, 31
        %s517 = smul.addr %s514, 32
        %s518 = sadd.s32 %s516, %s517
        %s519 = smul.addr %s518, 8
        %s520 = scalar_lea.vmem %s4, %s519
        %p521 = pneg %p178
        %p522 = pneg %p175
        %s523 = smul.u32 2, %s31
        %p524 = scmp.lt.s32.totalorder %s30, 1
        %s525 = scalar_select %p524, %s30, 1
        %p526 = scmp.lt.s32.totalorder %s523, 1
        %s527 = scalar_select %p526, %s523, 1
        %s528 = smul.addr %s525, 2
        %s529 = sadd.s32 %s527, %s528
        %s530 = scalar_lea.vmem %s5, %s529
        %p531 = pneg %p206
        %p532 = pneg %p203
        %s533 = smul.u32 16, %s29
        %p534 = scmp.lt.s32.totalorder %s30, 1
        %s535 = scalar_select %p534, %s30, 1
        %p536 = scmp.lt.s32.totalorder %s533, 31
        %s537 = scalar_select %p536, %s533, 31
        %s538 = smul.addr %s535, 32
        %s539 = sadd.s32 %s537, %s538
        %s540 = smul.addr %s539, 8
        %s541 = scalar_lea.vmem %s6, %s540
        %p542 = pneg %p234
        %p543 = pneg %p231
        %s544 = smul.u32 2, %s31
        %p545 = scmp.lt.s32.totalorder %s30, 1
        %s546 = scalar_select %p545, %s30, 1
        %p547 = scmp.lt.s32.totalorder %s544, 1
        %s548 = scalar_select %p547, %s544, 1
        %s549 = smul.addr %s546, 2
        %s550 = sadd.s32 %s548, %s549
        %s551 = scalar_lea.vmem %s7, %s550
        %p552 = pneg %p262
        %p553 = pneg %p259
        %p554 = pneg %p283
        %p555 = pneg %p280
        %p556 = pneg %p304
        %p557 = pneg %p301
        %p558 = pneg %p334
        %p559 = pneg %p331
        %s560 = sand.u32 %s321, 1
        %s561 = scalar_lea.sflag [#allocation4], %s560
        %s562 = sand.u32 %s321, 1
        %s563 = smul.addr %s562, 256
        %s564 = scalar_lea.vmem [#allocation3], %s563
        %s565 = smul.u32 16, %s29
        %p566 = scmp.lt.s32.totalorder %s30, 1
        %s567 = scalar_select %p566, %s30, 1
        %p568 = scmp.lt.s32.totalorder %s565, 31
        %s569 = scalar_select %p568, %s565, 31
        %s570 = smul.addr %s567, 32
        %s571 = sadd.s32 %s569, %s570
        %s572 = smul.addr %s571, 8
        %s573 = scalar_lea.vmem %s0, %s572
        %s574 = smul.u32 16, %s29
        %s575 = smul.u32 2, %s31
        %p576 = scmp.lt.s32.totalorder %s30, 1
        %s577 = scalar_select %p576, %s30, 1
        %p578 = scmp.lt.s32.totalorder %s575, 1
        %s579 = scalar_select %p578, %s575, 1
        %s580 = smul.addr %s577, 8
        %s581 = sadd.s32 %s579, %s580
        %s582 = smul.addr %s581, 8
        %s583 = scalar_lea.vmem %s1, %s582
        %s584 = smul.u32 2, %s31
        %s585 = smul.u32 16, %s29
        %p586 = scmp.lt.s32.totalorder %s30, 1
        %s587 = scalar_select %p586, %s30, 1
        %p588 = scmp.lt.s32.totalorder %s585, 31
        %s589 = scalar_select %p588, %s585, 31
        %s590 = smul.addr %s587, 32
        %s591 = sadd.s32 %s589, %s590
        %s592 = smul.addr %s591, 8
        %s593 = scalar_lea.vmem %s2, %s592
        %s594 = smul.u32 16, %s29
        %s595 = smul.u32 2, %s31
        %p596 = scmp.lt.s32.totalorder %s30, 1
        %s597 = scalar_select %p596, %s30, 1
        %p598 = scmp.lt.s32.totalorder %s595, 1
        %s599 = scalar_select %p598, %s595, 1
        %s600 = smul.addr %s597, 8
        %s601 = sadd.s32 %s599, %s600
        %s602 = smul.addr %s601, 8
        %s603 = scalar_lea.vmem %s3, %s602
        %s604 = smul.u32 2, %s31
        %s605 = smul.u32 16, %s29
        %p606 = scmp.lt.s32.totalorder %s30, 1
        %s607 = scalar_select %p606, %s30, 1
        %p608 = scmp.lt.s32.totalorder %s605, 31
        %s609 = scalar_select %p608, %s605, 31
        %s610 = smul.addr %s607, 32
        %s611 = sadd.s32 %s609, %s610
        %s612 = smul.addr %s611, 8
        %s613 = scalar_lea.vmem %s4, %s612
        %s614 = smul.u32 16, %s29
        %s615 = smul.u32 2, %s31
        %p616 = scmp.lt.s32.totalorder %s30, 1
        %s617 = scalar_select %p616, %s30, 1
        %p618 = scmp.lt.s32.totalorder %s615, 1
        %s619 = scalar_select %p618, %s615, 1
        %s620 = smul.addr %s617, 2
        %s621 = sadd.s32 %s619, %s620
        %s622 = scalar_lea.vmem %s5, %s621
        %s623 = smul.u32 2, %s31
        %s624 = smul.u32 16, %s29
        %p625 = scmp.lt.s32.totalorder %s30, 1
        %s626 = scalar_select %p625, %s30, 1
        %p627 = scmp.lt.s32.totalorder %s624, 31
        %s628 = scalar_select %p627, %s624, 31
        %s629 = smul.addr %s626, 32
        %s630 = sadd.s32 %s628, %s629
        %s631 = smul.addr %s630, 8
        %s632 = scalar_lea.vmem %s6, %s631
        %s633 = smul.u32 16, %s29
        %s634 = smul.u32 2, %s31
        %p635 = scmp.lt.s32.totalorder %s30, 1
        %s636 = scalar_select %p635, %s30, 1
        %p637 = scmp.lt.s32.totalorder %s634, 1
        %s638 = scalar_select %p637, %s634, 1
        %s639 = smul.addr %s636, 2
        %s640 = sadd.s32 %s638, %s639
        %s641 = scalar_lea.vmem %s7, %s640
        %s642 = smul.u32 2, %s31
        %s643 = smul.u32 16, %s29
        %s644 = smul.u32 2, %s31
        %v645 = vld [vmem:[%s573] sm:$0xff]
        %v646 = vld [vmem:[%s573 + $0x8] sm:$0xff]
        %v647 = vld [vmem:[%s573 + $0x10] sm:$0xff]
        %v648 = vld [vmem:[%s573 + $0x18] sm:$0xff]
        %v649 = vld [vmem:[%s573 + $0x20] sm:$0xff]
        %v650 = vld [vmem:[%s573 + $0x28] sm:$0xff]
        %v651 = vld [vmem:[%s573 + $0x30] sm:$0xff]
        %v652 = vld [vmem:[%s573 + $0x38] sm:$0xff]
        %v653 = vld [vmem:[%s573 + $0x40] sm:$0xff]
        %v654 = vld [vmem:[%s573 + $0x48] sm:$0xff]
        %v655 = vld [vmem:[%s573 + $0x50] sm:$0xff]
        %v656 = vld [vmem:[%s573 + $0x58] sm:$0xff]
        %v657 = vld [vmem:[%s573 + $0x60] sm:$0xff]
        %v658 = vld [vmem:[%s573 + $0x68] sm:$0xff]
        %v659 = vld [vmem:[%s573 + $0x70] sm:$0xff]
        %v660 = vld [vmem:[%s573 + $0x78] sm:$0xff]
        %v661 = vld [vmem:[%s583] sm:$0xff]
        %v662 = vld [vmem:[%s583 + $0x8] sm:$0xff]
        %v663 = vld [vmem:[%s583 + $0x10] sm:$0xff]
        %v664 = vld [vmem:[%s583 + $0x18] sm:$0xff]
        %v665 = vld [vmem:[%s583 + $0x20] sm:$0xff]
        %v666 = vld [vmem:[%s583 + $0x28] sm:$0xff]
        %v667 = vld [vmem:[%s583 + $0x30] sm:$0xff]
        %v668 = vld [vmem:[%s583 + $0x38] sm:$0xff]
        %vm669 = vcmask 261120
        %v671 = vsel %vm669, %v645, 0
        %v674 = vsel %vm669, %v646, 0
        %v677 = vsel %vm669, %v647, 0
        %v680 = vsel %vm669, %v648, 0
        %v683 = vsel %vm669, %v649, 0
        %v686 = vsel %vm669, %v650, 0
        %v689 = vsel %vm669, %v651, 0
        %v692 = vsel %vm669, %v652, 0
        %v695 = vsel %vm669, %v653, 0
        %v698 = vsel %vm669, %v654, 0
        %v701 = vsel %vm669, %v655, 0
        %v704 = vsel %vm669, %v656, 0
        %v707 = vsel %vm669, %v657, 0
        %v710 = vsel %vm669, %v658, 0
        %v713 = vsel %vm669, %v659, 0
        %v716 = vsel %vm669, %v660, 0
        %718 = vmatprep.subr.mxu0 %v662
        %719 = vmatpush1.msra.mxu0 %v661
        %720 = vmatprep.subr.mxu0 %v664
        %721 = vmatpush1.msra.mxu0 %v663
        %722 = vmatprep.subr.mxu0 %v666
        %723 = vmatpush1.msra.mxu0 %v665
        %724 = vmatprep.subr.mxu0 %v668
        %725 = vmatpush1.msra.mxu0 %v667
        %726 = vmatprep.subr.mxu0 0.0
        %727 = vmatpush1.msra.mxu0 0.0
        %728 = vmatprep.subr.mxu0 0.0
        %729 = vmatpush1.msra.mxu0 0.0
        %730 = vmatprep.subr.mxu0 0.0
        %731 = vmatpush1.msra.mxu0 0.0
        %732 = vmatprep.subr.mxu0 0.0
        %733 = vmatpush1.msra.mxu0 0.0
        %734 = vmatprep.subr.mxu0 0.0
        %735 = vmatpush1.msra.mxu0 0.0
        %736 = vmatprep.subr.mxu0 0.0
        %737 = vmatpush1.msra.mxu0 0.0
        %738 = vmatprep.subr.mxu0 0.0
        %739 = vmatpush1.msra.mxu0 0.0
        %740 = vmatprep.subr.mxu0 0.0
        %741 = vmatpush1.msra.mxu0 0.0
        %742 = vmatprep.subr.mxu0 0.0
        %743 = vmatpush1.msra.mxu0 0.0
        %744 = vmatprep.subr.mxu0 0.0
        %745 = vmatpush1.msra.mxu0 0.0
        %746 = vmatprep.subr.mxu0 0.0
        %747 = vmatpush1.msra.mxu0 0.0
        %748 = vmatprep.subr.mxu0 0.0
        %749 = vmatpush1.msra.mxu0 0.0
        %750 = vmatprep.subr.mxu0 0.0
        %751 = vmatpush1.msra.mxu0 0.0
        %752 = vmatprep.subr.mxu0 0.0
        %753 = vmatpush1.msra.mxu0 0.0
        %754 = vmatprep.subr.mxu0 0.0
        %755 = vmatpush1.msra.mxu0 0.0
        %756 = vmatprep.subr.mxu0 0.0
        %757 = vmatpush1.msra.mxu0 0.0
        %758 = vmatprep.subr.mxu0 0.0
        %759 = vmatpush1.msra.mxu0 0.0
        %760 = vmatprep.subr.mxu0 0.0
        %761 = vmatpush1.msra.mxu0 0.0
        %762 = vmatprep.subr.mxu0 0.0
        %763 = vmatpush1.msra.mxu0 0.0
        %764 = vmatprep.subr.mxu0 0.0
        %765 = vmatpush1.msra.mxu0 0.0
        %766 = vmatprep.subr.mxu0 0.0
        %767 = vmatpush1.msra.mxu0 0.0
        %768 = vmatprep.subr.mxu0 0.0
        %769 = vmatpush1.msra.mxu0 0.0
        %770 = vmatprep.subr.mxu0 0.0
        %771 = vmatpush1.msra.mxu0 0.0
        %772 = vmatprep.subr.mxu0 0.0
        %773 = vmatpush1.msra.mxu0 0.0
        %774 = vmatprep.subr.mxu0 0.0
        %775 = vmatpush1.msra.mxu0 0.0
        %776 = vmatprep.subr.mxu0 0.0
        %777 = vmatpush1.msra.mxu0 0.0
        %778 = vmatprep.subr.mxu0 0.0
        %779 = vmatpush1.msra.mxu0 0.0
        %780 = vmatprep.subr.mxu0 0.0
        %781 = vmatpush1.msra.mxu0 0.0
        %782 = vmatprep.mubr.f32.mxu0 0.0
        %783 = vmatmul.mubr.f32.gmra.mrb[0].mxu0 %v671
        %v784 = vpop.f32.mrb[0].mxu0
        %v785 = vadd.f32 0.0, %v784
        %v786 = vpop.f32.mrb[0].mxu0
        %v787 = vadd.f32 0.0, %v786
        %788 = vmatprep.mubr.f32.mxu0 0.0
        %789 = vmatmul.mubr.f32.gmra.mrb[0].mxu0 %v674
        %v790 = vpop.f32.mrb[0].mxu0
        %v791 = vadd.f32 0.0, %v790
        %v792 = vpop.f32.mrb[0].mxu0
        %v793 = vadd.f32 0.0, %v792
        %794 = vmatprep.mubr.f32.mxu0 0.0
        %795 = vmatmul.mubr.f32.gmra.mrb[0].mxu0 %v677
        %v796 = vpop.f32.mrb[0].mxu0
        %v797 = vadd.f32 0.0, %v796
        %v798 = vpop.f32.mrb[0].mxu0
        %v799 = vadd.f32 0.0, %v798
        %800 = vmatprep.mubr.f32.mxu0 0.0
        %801 = vmatmul.mubr.f32.gmra.mrb[0].mxu0 %v680
        %v802 = vpop.f32.mrb[0].mxu0
        %v803 = vadd.f32 0.0, %v802
        %v804 = vpop.f32.mrb[0].mxu0
        %v805 = vadd.f32 0.0, %v804
        %806 = vmatprep.mubr.f32.mxu0 0.0
        %807 = vmatmul.mubr.f32.gmra.mrb[0].mxu0 %v683
        %v808 = vpop.f32.mrb[0].mxu0
        %v809 = vadd.f32 0.0, %v808
        %v810 = vpop.f32.mrb[0].mxu0
        %v811 = vadd.f32 0.0, %v810
        %812 = vmatprep.mubr.f32.mxu0 0.0
        %813 = vmatmul.mubr.f32.gmra.mrb[0].mxu0 %v686
        %v814 = vpop.f32.mrb[0].mxu0
        %v815 = vadd.f32 0.0, %v814
        %v816 = vpop.f32.mrb[0].mxu0
        %v817 = vadd.f32 0.0, %v816
        %818 = vmatprep.mubr.f32.mxu0 0.0
        %819 = vmatmul.mubr.f32.gmra.mrb[0].mxu0 %v689
        %v820 = vpop.f32.mrb[0].mxu0
        %v821 = vadd.f32 0.0, %v820
        %v822 = vpop.f32.mrb[0].mxu0
        %v823 = vadd.f32 0.0, %v822
        %824 = vmatprep.mubr.f32.mxu0 0.0
        %825 = vmatmul.mubr.f32.gmra.mrb[0].mxu0 %v692
        %v826 = vpop.f32.mrb[0].mxu0
        %v827 = vadd.f32 0.0, %v826
        %v828 = vpop.f32.mrb[0].mxu0
        %v829 = vadd.f32 0.0, %v828
        %830 = vmatprep.mubr.f32.mxu0 0.0
        %831 = vmatmul.mubr.f32.gmra.mrb[0].mxu0 %v695
        %v832 = vpop.f32.mrb[0].mxu0
        %v833 = vadd.f32 0.0, %v832
        %v834 = vpop.f32.mrb[0].mxu0
        %v835 = vadd.f32 0.0, %v834
        %836 = vmatprep.mubr.f32.mxu0 0.0
        %837 = vmatmul.mubr.f32.gmra.mrb[0].mxu0 %v698
        %v838 = vpop.f32.mrb[0].mxu0
        %v839 = vadd.f32 0.0, %v838
        %v840 = vpop.f32.mrb[0].mxu0
        %v841 = vadd.f32 0.0, %v840
        %842 = vmatprep.mubr.f32.mxu0 0.0
        %843 = vmatmul.mubr.f32.gmra.mrb[0].mxu0 %v701
        %v844 = vpop.f32.mrb[0].mxu0
        %v845 = vadd.f32 0.0, %v844
        %v846 = vpop.f32.mrb[0].mxu0
        %v847 = vadd.f32 0.0, %v846
        %848 = vmatprep.mubr.f32.mxu0 0.0
        %849 = vmatmul.mubr.f32.gmra.mrb[0].mxu0 %v704
        %v850 = vpop.f32.mrb[0].mxu0
        %v851 = vadd.f32 0.0, %v850
        %v852 = vpop.f32.mrb[0].mxu0
        %v853 = vadd.f32 0.0, %v852
        %854 = vmatprep.mubr.f32.mxu0 0.0
        %855 = vmatmul.mubr.f32.gmra.mrb[0].mxu0 %v707
        %v856 = vpop.f32.mrb[0].mxu0
        %v857 = vadd.f32 0.0, %v856
        %v858 = vpop.f32.mrb[0].mxu0
        %v859 = vadd.f32 0.0, %v858
        %860 = vmatprep.mubr.f32.mxu0 0.0
        %861 = vmatmul.mubr.f32.gmra.mrb[0].mxu0 %v710
        %v862 = vpop.f32.mrb[0].mxu0
        %v863 = vadd.f32 0.0, %v862
        %v864 = vpop.f32.mrb[0].mxu0
        %v865 = vadd.f32 0.0, %v864
        %866 = vmatprep.mubr.f32.mxu0 0.0
        %867 = vmatmul.mubr.f32.gmra.mrb[0].mxu0 %v713
        %v868 = vpop.f32.mrb[0].mxu0
        %v869 = vadd.f32 0.0, %v868
        %v870 = vpop.f32.mrb[0].mxu0
        %v871 = vadd.f32 0.0, %v870
        %872 = vmatprep.mubr.f32.mxu0 0.0
        %873 = vmatmul.mubr.f32.gmra.mrb[0].mxu0 %v716
        %v874 = vpop.f32.mrb[0].mxu0
        %v875 = vadd.f32 0.0, %v874
        %v876 = vpop.f32.mrb[0].mxu0
        %v877 = vadd.f32 0.0, %v876
        %878 = vdwg.mxu0
        %v879 = vld [vmem:[%s613] sm:$0xff]
        %v880 = vld [vmem:[%s613 + $0x8] sm:$0xff]
        %v881 = vld [vmem:[%s613 + $0x10] sm:$0xff]
        %v882 = vld [vmem:[%s613 + $0x18] sm:$0xff]
        %v883 = vld [vmem:[%s613 + $0x20] sm:$0xff]
        %v884 = vld [vmem:[%s613 + $0x28] sm:$0xff]
        %v885 = vld [vmem:[%s613 + $0x30] sm:$0xff]
        %v886 = vld [vmem:[%s613 + $0x38] sm:$0xff]
        %v887 = vld [vmem:[%s613 + $0x40] sm:$0xff]
        %v888 = vld [vmem:[%s613 + $0x48] sm:$0xff]
        %v889 = vld [vmem:[%s613 + $0x50] sm:$0xff]
        %v890 = vld [vmem:[%s613 + $0x58] sm:$0xff]
        %v891 = vld [vmem:[%s613 + $0x60] sm:$0xff]
        %v892 = vld [vmem:[%s613 + $0x68] sm:$0xff]
        %v893 = vld [vmem:[%s613 + $0x70] sm:$0xff]
        %v894 = vld [vmem:[%s613 + $0x78] sm:$0xff]
        %v895 = vld [vmem:[%s622] sm:$0x3]
        %897 = vset.pattern.permute.xlu0 0
        %898 = vperm.xlu0 %897, %v879
        %v899 = vpop.permute.xlu0 %898
        %902 = vset.pattern.permute.xlu0 0
        %903 = vperm.xlu0 %902, %v880
        %v904 = vpop.permute.xlu0 %903
        %907 = vset.pattern.permute.xlu0 0
        %908 = vperm.xlu0 %907, %v881
        %v909 = vpop.permute.xlu0 %908
        %912 = vset.pattern.permute.xlu0 0
        %913 = vperm.xlu0 %912, %v882
        %v914 = vpop.permute.xlu0 %913
        %917 = vset.pattern.permute.xlu0 0
        %918 = vperm.xlu0 %917, %v883
        %v919 = vpop.permute.xlu0 %918
        %922 = vset.pattern.permute.xlu0 0
        %923 = vperm.xlu0 %922, %v884
        %v924 = vpop.permute.xlu0 %923
        %927 = vset.pattern.permute.xlu0 0
        %928 = vperm.xlu0 %927, %v885
        %v929 = vpop.permute.xlu0 %928
        %932 = vset.pattern.permute.xlu0 0
        %933 = vperm.xlu0 %932, %v886
        %v934 = vpop.permute.xlu0 %933
        %937 = vset.pattern.permute.xlu0 0
        %938 = vperm.xlu0 %937, %v887
        %v939 = vpop.permute.xlu0 %938
        %942 = vset.pattern.permute.xlu0 0
        %943 = vperm.xlu0 %942, %v888
        %v944 = vpop.permute.xlu0 %943
        %947 = vset.pattern.permute.xlu0 0
        %948 = vperm.xlu0 %947, %v889
        %v949 = vpop.permute.xlu0 %948
        %952 = vset.pattern.permute.xlu0 0
        %953 = vperm.xlu0 %952, %v890
        %v954 = vpop.permute.xlu0 %953
        %957 = vset.pattern.permute.xlu0 0
        %958 = vperm.xlu0 %957, %v891
        %v959 = vpop.permute.xlu0 %958
        %962 = vset.pattern.permute.xlu0 0
        %963 = vperm.xlu0 %962, %v892
        %v964 = vpop.permute.xlu0 %963
        %967 = vset.pattern.permute.xlu0 0
        %968 = vperm.xlu0 %967, %v893
        %v969 = vpop.permute.xlu0 %968
        %972 = vset.pattern.permute.xlu0 0
        %973 = vperm.xlu0 %972, %v894
        %v974 = vpop.permute.xlu0 %973
        %v977 = vlaneseq
        %v978 = vshrl.u32 %v977, 7
        %v979 = vsub.s32 0, %v978
        %v980 = vrot.slane %v895, %v979
        %v981 = vlaneseq
        %v982 = vshrl.u32 %v981, 7
        %v983 = vsub.s32 1, %v982
        %v984 = vrot.slane %v895, %v983
        %v987 = vadd.f32 %v899, %v980
        %v988 = vadd.f32 %v899, %v984
        %v989 = vadd.f32 %v904, %v980
        %v990 = vadd.f32 %v904, %v984
        %v991 = vadd.f32 %v909, %v980
        %v992 = vadd.f32 %v909, %v984
        %v993 = vadd.f32 %v914, %v980
        %v994 = vadd.f32 %v914, %v984
        %v995 = vadd.f32 %v919, %v980
        %v996 = vadd.f32 %v919, %v984
        %v997 = vadd.f32 %v924, %v980
        %v998 = vadd.f32 %v924, %v984
        %v999 = vadd.f32 %v929, %v980
        %v1000 = vadd.f32 %v929, %v984
        %v1001 = vadd.f32 %v934, %v980
        %v1002 = vadd.f32 %v934, %v984
        %v1003 = vadd.f32 %v939, %v980
        %v1004 = vadd.f32 %v939, %v984
        %v1005 = vadd.f32 %v944, %v980
        %v1006 = vadd.f32 %v944, %v984
        %v1007 = vadd.f32 %v949, %v980
        %v1008 = vadd.f32 %v949, %v984
        %v1009 = vadd.f32 %v954, %v980
        %v1010 = vadd.f32 %v954, %v984
        %v1011 = vadd.f32 %v959, %v980
        %v1012 = vadd.f32 %v959, %v984
        %v1013 = vadd.f32 %v964, %v980
        %v1014 = vadd.f32 %v964, %v984
        %v1015 = vadd.f32 %v969, %v980
        %v1016 = vadd.f32 %v969, %v984
        %v1017 = vadd.f32 %v974, %v980
        %v1018 = vadd.f32 %v974, %v984
        %v1019 = vmul.f32 %v785, 0.0625
        %v1020 = vmul.f32 %v787, 0.0625
        %v1021 = vmul.f32 %v791, 0.0625
        %v1022 = vmul.f32 %v793, 0.0625
        %v1023 = vmul.f32 %v797, 0.0625
        %v1024 = vmul.f32 %v799, 0.0625
        %v1025 = vmul.f32 %v803, 0.0625
        %v1026 = vmul.f32 %v805, 0.0625
        %v1027 = vmul.f32 %v809, 0.0625
        %v1028 = vmul.f32 %v811, 0.0625
        %v1029 = vmul.f32 %v815, 0.0625
        %v1030 = vmul.f32 %v817, 0.0625
        %v1031 = vmul.f32 %v821, 0.0625
        %v1032 = vmul.f32 %v823, 0.0625
        %v1033 = vmul.f32 %v827, 0.0625
        %v1034 = vmul.f32 %v829, 0.0625
        %v1035 = vmul.f32 %v833, 0.0625
        %v1036 = vmul.f32 %v835, 0.0625
        %v1037 = vmul.f32 %v839, 0.0625
        %v1038 = vmul.f32 %v841, 0.0625
        %v1039 = vmul.f32 %v845, 0.0625
        %v1040 = vmul.f32 %v847, 0.0625
        %v1041 = vmul.f32 %v851, 0.0625
        %v1042 = vmul.f32 %v853, 0.0625
        %v1043 = vmul.f32 %v857, 0.0625
        %v1044 = vmul.f32 %v859, 0.0625
        %v1045 = vmul.f32 %v863, 0.0625
        %v1046 = vmul.f32 %v865, 0.0625
        %v1047 = vmul.f32 %v869, 0.0625
        %v1048 = vmul.f32 %v871, 0.0625
        %v1049 = vmul.f32 %v875, 0.0625
        %v1050 = vmul.f32 %v877, 0.0625
        %v1051 = vadd.f32 %v987, %v1019
        %v1052 = vadd.f32 %v988, %v1020
        %v1053 = vadd.f32 %v989, %v1021
        %v1054 = vadd.f32 %v990, %v1022
        %v1055 = vadd.f32 %v991, %v1023
        %v1056 = vadd.f32 %v992, %v1024
        %v1057 = vadd.f32 %v993, %v1025
        %v1058 = vadd.f32 %v994, %v1026
        %v1059 = vadd.f32 %v995, %v1027
        %v1060 = vadd.f32 %v996, %v1028
        %v1061 = vadd.f32 %v997, %v1029
        %v1062 = vadd.f32 %v998, %v1030
        %v1063 = vadd.f32 %v999, %v1031
        %v1064 = vadd.f32 %v1000, %v1032
        %v1065 = vadd.f32 %v1001, %v1033
        %v1066 = vadd.f32 %v1002, %v1034
        %v1067 = vadd.f32 %v1003, %v1035
        %v1068 = vadd.f32 %v1004, %v1036
        %v1069 = vadd.f32 %v1005, %v1037
        %v1070 = vadd.f32 %v1006, %v1038
        %v1071 = vadd.f32 %v1007, %v1039
        %v1072 = vadd.f32 %v1008, %v1040
        %v1073 = vadd.f32 %v1009, %v1041
        %v1074 = vadd.f32 %v1010, %v1042
        %v1075 = vadd.f32 %v1011, %v1043
        %v1076 = vadd.f32 %v1012, %v1044
        %v1077 = vadd.f32 %v1013, %v1045
        %v1078 = vadd.f32 %v1014, %v1046
        %v1079 = vadd.f32 %v1015, %v1047
        %v1080 = vadd.f32 %v1016, %v1048
        %v1081 = vadd.f32 %v1017, %v1049
        %v1082 = vadd.f32 %v1018, %v1050
        %v1083 = vadd.f32 %v1051, 1e-05
        %v1084 = vadd.f32 %v1052, 1e-05
        %v1085 = vadd.f32 %v1053, 1e-05
        %v1086 = vadd.f32 %v1054, 1e-05
        %v1087 = vadd.f32 %v1055, 1e-05
        %v1088 = vadd.f32 %v1056, 1e-05
        %v1089 = vadd.f32 %v1057, 1e-05
        %v1090 = vadd.f32 %v1058, 1e-05
        %v1091 = vadd.f32 %v1059, 1e-05
        %v1092 = vadd.f32 %v1060, 1e-05
        %v1093 = vadd.f32 %v1061, 1e-05
        %v1094 = vadd.f32 %v1062, 1e-05
        %v1095 = vadd.f32 %v1063, 1e-05
        %v1096 = vadd.f32 %v1064, 1e-05
        %v1097 = vadd.f32 %v1065, 1e-05
        %v1098 = vadd.f32 %v1066, 1e-05
        %v1099 = vadd.f32 %v1067, 1e-05
        %v1100 = vadd.f32 %v1068, 1e-05
        %v1101 = vadd.f32 %v1069, 1e-05
        %v1102 = vadd.f32 %v1070, 1e-05
        %v1103 = vadd.f32 %v1071, 1e-05
        %v1104 = vadd.f32 %v1072, 1e-05
        %v1105 = vadd.f32 %v1073, 1e-05
        %v1106 = vadd.f32 %v1074, 1e-05
        %v1107 = vadd.f32 %v1075, 1e-05
        %v1108 = vadd.f32 %v1076, 1e-05
        %v1109 = vadd.f32 %v1077, 1e-05
        %v1110 = vadd.f32 %v1078, 1e-05
        %v1111 = vadd.f32 %v1079, 1e-05
        %v1112 = vadd.f32 %v1080, 1e-05
        %v1113 = vadd.f32 %v1081, 1e-05
        %v1114 = vadd.f32 %v1082, 1e-05
        %v1115 = vrsqrt.pop %v1083
        %v1116 = vrsqrt.pop %v1084
        %v1117 = vrsqrt.pop %v1085
        %v1118 = vrsqrt.pop %v1086
        %v1119 = vrsqrt.pop %v1087
        %v1120 = vrsqrt.pop %v1088
        %v1121 = vrsqrt.pop %v1089
        %v1122 = vrsqrt.pop %v1090
        %v1123 = vrsqrt.pop %v1091
        %v1124 = vrsqrt.pop %v1092
        %v1125 = vrsqrt.pop %v1093
        %v1126 = vrsqrt.pop %v1094
        %v1127 = vrsqrt.pop %v1095
        %v1128 = vrsqrt.pop %v1096
        %v1129 = vrsqrt.pop %v1097
        %v1130 = vrsqrt.pop %v1098
        %v1131 = vrsqrt.pop %v1099
        %v1132 = vrsqrt.pop %v1100
        %v1133 = vrsqrt.pop %v1101
        %v1134 = vrsqrt.pop %v1102
        %v1135 = vrsqrt.pop %v1103
        %v1136 = vrsqrt.pop %v1104
        %v1137 = vrsqrt.pop %v1105
        %v1138 = vrsqrt.pop %v1106
        %v1139 = vrsqrt.pop %v1107
        %v1140 = vrsqrt.pop %v1108
        %v1141 = vrsqrt.pop %v1109
        %v1142 = vrsqrt.pop %v1110
        %v1143 = vrsqrt.pop %v1111
        %v1144 = vrsqrt.pop %v1112
        %v1145 = vrsqrt.pop %v1113
        %v1146 = vrsqrt.pop %v1114
        %1147 = vst [vmem:[#allocation2] sm:$0xff] %v1115
        %1148 = vst [vmem:[#allocation2 + $0x8] sm:$0xff] %v1116
        %1149 = vst [vmem:[#allocation2 + $0x10] sm:$0xff] %v1117
        %1150 = vst [vmem:[#allocation2 + $0x18] sm:$0xff] %v1118
        %1151 = vst [vmem:[#allocation2 + $0x20] sm:$0xff] %v1119
        %1152 = vst [vmem:[#allocation2 + $0x28] sm:$0xff] %v1120
        %1153 = vst [vmem:[#allocation2 + $0x30] sm:$0xff] %v1121
        %1154 = vst [vmem:[#allocation2 + $0x38] sm:$0xff] %v1122
        %1155 = vst [vmem:[#allocation2 + $0x40] sm:$0xff] %v1123
        %1156 = vst [vmem:[#allocation2 + $0x48] sm:$0xff] %v1124
        %1157 = vst [vmem:[#allocation2 + $0x50] sm:$0xff] %v1125
        %1158 = vst [vmem:[#allocation2 + $0x58] sm:$0xff] %v1126
        %1159 = vst [vmem:[#allocation2 + $0x60] sm:$0xff] %v1127
        %1160 = vst [vmem:[#allocation2 + $0x68] sm:$0xff] %v1128
        %1161 = vst [vmem:[#allocation2 + $0x70] sm:$0xff] %v1129
        %1162 = vst [vmem:[#allocation2 + $0x78] sm:$0xff] %v1130
        %1163 = vst [vmem:[#allocation2 + $0x80] sm:$0xff] %v1131
        %1164 = vst [vmem:[#allocation2 + $0x88] sm:$0xff] %v1132
        %1165 = vst [vmem:[#allocation2 + $0x90] sm:$0xff] %v1133
        %1166 = vst [vmem:[#allocation2 + $0x98] sm:$0xff] %v1134
        %1167 = vst [vmem:[#allocation2 + $0xa0] sm:$0xff] %v1135
        %1168 = vst [vmem:[#allocation2 + $0xa8] sm:$0xff] %v1136
        %1169 = vst [vmem:[#allocation2 + $0xb0] sm:$0xff] %v1137
        %1170 = vst [vmem:[#allocation2 + $0xb8] sm:$0xff] %v1138
        %1171 = vst [vmem:[#allocation2 + $0xc0] sm:$0xff] %v1139
        %1172 = vst [vmem:[#allocation2 + $0xc8] sm:$0xff] %v1140
        %1173 = vst [vmem:[#allocation2 + $0xd0] sm:$0xff] %v1141
        %1174 = vst [vmem:[#allocation2 + $0xd8] sm:$0xff] %v1142
        %1175 = vst [vmem:[#allocation2 + $0xe0] sm:$0xff] %v1143
        %1176 = vst [vmem:[#allocation2 + $0xe8] sm:$0xff] %v1144
        %1177 = vst [vmem:[#allocation2 + $0xf0] sm:$0xff] %v1145
        %1178 = vst [vmem:[#allocation2 + $0xf8] sm:$0xff] %v1146
        %v1179 = vld [vmem:[%s603] sm:$0xff]
        %v1180 = vld [vmem:[%s603 + $0x8] sm:$0xff]
        %v1181 = vld [vmem:[%s603 + $0x10] sm:$0xff]
        %v1182 = vld [vmem:[%s603 + $0x18] sm:$0xff]
        %v1183 = vld [vmem:[%s603 + $0x20] sm:$0xff]
        %v1184 = vld [vmem:[%s603 + $0x28] sm:$0xff]
        %v1185 = vld [vmem:[%s603 + $0x30] sm:$0xff]
        %v1186 = vld [vmem:[%s603 + $0x38] sm:$0xff]
        %v1187 = vld [vmem:[%s8] sm:$0xff]
        %v1188 = vld [vmem:[%s8 + $0x8] sm:$0xff]
        %v1189 = vld [vmem:[%s8 + $0x10] sm:$0xff]
        %v1190 = vld [vmem:[%s8 + $0x18] sm:$0xff]
        %v1191 = vld [vmem:[%s9] sm:$0xff]
        %v1192 = vld [vmem:[%s9 + $0x8] sm:$0xff]
        %v1193 = vld [vmem:[%s9 + $0x10] sm:$0xff]
        %v1194 = vld [vmem:[%s9 + $0x18] sm:$0xff]
        %v1195 = vld [vmem:[%s641] sm:$0x3]
        loop: start=0, step=1, limit=16
        $region61: #{tpu_custom_call.1} parent=59 // loop_pre_header
          _
        $region62: #{tpu_custom_call.1} parent=59 // loop_header
          %s1197 = sphi 0, %s1201
          %p1198 = scmp.ge.s32.totalorder %s1197, 16
        $region63: #{tpu_custom_call.1} parent=59 // loop_header_branch
          %1200 = sbr.rel (%p1198) target = $region67
        $region64: #{tpu_custom_call.1} parent=59 // loop_body
          %s1202 = smul.u32 %s1197, 8
          %s1203 = sshra.s32 %s1202, 3
          %s1204 = sand.u32 %s1202, 7
          %s1205 = smul.u32 %s1203, 2
          %s1206 = smul.addr %s1205, 8
          %s1207 = scalar_lea.vmem [#allocation2], %s1206
          %v1208 = vld [vmem:[%s1207] sm:$0xff]
          %v1209 = vld [vmem:[%s1207 + $0x8] sm:$0xff]
          %s1210 = scalar_lea.vmem %s593, %s1202
          %v1211 = vld [vmem:[%s1210] sm:$0xff]
          %v1214 = vcombine.low %v1208, %v1209
          %v1215 = vcombine.high %v1208, %v1209
          %v1217 = vunpack.c.l.s4 1966171168
          %v1218 = vunpack.c.0.s8 %v1217
          %v1219 = vlaneseq
          %v1220 = vshrl.u32 %v1219, 7
          %v1221 = vsub.s32 %v1218, %v1220
          %v1222 = vrot.slane %v1214, %v1221
          %v1224 = vunpack.c.l.s4 1966171168
          %v1225 = vunpack.c.0.s8 %v1224
          %v1226 = vlaneseq
          %v1227 = vshrl.u32 %v1226, 7
          %v1228 = vsub.s32 %v1225, %v1227
          %v1229 = vrot.slane %v1215, %v1228
          %v1230 = vcombine.high %v1222, %v1222
          %v1231 = vcombine.high %v1229, %v1229
          %v1233 = vunpack.c.l.s4 1966171168
          %v1234 = vunpack.c.0.s8 %v1233
          %v1235 = vlaneseq
          %v1236 = vshrl.u32 %v1235, 7
          %v1237 = vsub.s32 %v1234, %v1236
          %v1238 = vrot.slane %v1222, %v1237
          %v1240 = vunpack.c.l.s4 1966171168
          %v1241 = vunpack.c.0.s8 %v1240
          %v1242 = vlaneseq
          %v1243 = vshrl.u32 %v1242, 7
          %v1244 = vsub.s32 %v1241, %v1243
          %v1245 = vrot.slane %v1229, %v1244
          %v1247 = vunpack.c.l.s4 1966171168
          %v1248 = vunpack.c.0.s8 %v1247
          %v1249 = vlaneseq
          %v1250 = vshrl.u32 %v1249, 7
          %v1251 = vsub.s32 %v1248, %v1250
          %v1252 = vrot.slane %v1230, %v1251
          %v1254 = vunpack.c.l.s4 1966171168
          %v1255 = vunpack.c.0.s8 %v1254
          %v1256 = vlaneseq
          %v1257 = vshrl.u32 %v1256, 7
          %v1258 = vsub.s32 %v1255, %v1257
          %v1259 = vrot.slane %v1231, %v1258
          %v1260 = vcombine.high %v1238, %v1238
          %v1261 = vcombine.high %v1245, %v1245
          %v1262 = vcombine.high %v1252, %v1252
          %v1263 = vcombine.high %v1259, %v1259
          %v1264 = vlaneseq
          %v1265 = vshrl.u32 %v1264, 7
          %v1266 = vsub.s32 0, %v1265
          %v1267 = vrot.slane %v1211, %v1266
          %1269 = vbcast.lane.b32.xlu0 %v1267, 256
          %v1270 = vpop.permute.xlu0 %1269
          %s1272 = sor.u32 256, 8
          %1273 = vbcast.lane.b32.xlu0 %v1267, %s1272
          %v1274 = vpop.permute.xlu0 %1273
          %s1276 = sor.u32 256, 16
          %1277 = vbcast.lane.b32.xlu0 %v1267, %s1276
          %v1278 = vpop.permute.xlu0 %1277
          %s1280 = sor.u32 256, 24
          %1281 = vbcast.lane.b32.xlu0 %v1267, %s1280
          %v1282 = vpop.permute.xlu0 %1281
          %v1283 = vlaneseq
          %v1284 = vshrl.u32 %v1283, 7
          %v1285 = vsub.s32 1, %v1284
          %v1286 = vrot.slane %v1211, %v1285
          %1288 = vbcast.lane.b32.xlu0 %v1286, 256
          %v1289 = vpop.permute.xlu0 %1288
          %s1291 = sor.u32 256, 8
          %1292 = vbcast.lane.b32.xlu0 %v1286, %s1291
          %v1293 = vpop.permute.xlu0 %1292
          %s1295 = sor.u32 256, 16
          %1296 = vbcast.lane.b32.xlu0 %v1286, %s1295
          %v1297 = vpop.permute.xlu0 %1296
          %s1299 = sor.u32 256, 24
          %1300 = vbcast.lane.b32.xlu0 %v1286, %s1299
          %v1301 = vpop.permute.xlu0 %1300
          %v1302 = vlaneseq
          %v1303 = vshrl.u32 %v1302, 7
          %v1304 = vsub.s32 2, %v1303
          %v1305 = vrot.slane %v1211, %v1304
          %1307 = vbcast.lane.b32.xlu0 %v1305, 256
          %v1308 = vpop.permute.xlu0 %1307
          %s1310 = sor.u32 256, 8
          %1311 = vbcast.lane.b32.xlu0 %v1305, %s1310
          %v1312 = vpop.permute.xlu0 %1311
          %s1314 = sor.u32 256, 16
          %1315 = vbcast.lane.b32.xlu0 %v1305, %s1314
          %v1316 = vpop.permute.xlu0 %1315
          %s1318 = sor.u32 256, 24
          %1319 = vbcast.lane.b32.xlu0 %v1305, %s1318
          %v1320 = vpop.permute.xlu0 %1319
          %v1321 = vlaneseq
          %v1322 = vshrl.u32 %v1321, 7
          %v1323 = vsub.s32 3, %v1322
          %v1324 = vrot.slane %v1211, %v1323
          %1326 = vbcast.lane.b32.xlu0 %v1324, 256
          %v1327 = vpop.permute.xlu0 %1326
          %s1329 = sor.u32 256, 8
          %1330 = vbcast.lane.b32.xlu0 %v1324, %s1329
          %v1331 = vpop.permute.xlu0 %1330
          %s1333 = sor.u32 256, 16
          %1334 = vbcast.lane.b32.xlu0 %v1324, %s1333
          %v1335 = vpop.permute.xlu0 %1334
          %s1337 = sor.u32 256, 24
          %1338 = vbcast.lane.b32.xlu0 %v1324, %s1337
          %v1339 = vpop.permute.xlu0 %1338
          %v1340 = vlaneseq
          %v1341 = vshrl.u32 %v1340, 7
          %v1342 = vsub.s32 4, %v1341
          %v1343 = vrot.slane %v1211, %v1342
          %1345 = vbcast.lane.b32.xlu0 %v1343, 256
          %v1346 = vpop.permute.xlu0 %1345
          %s1348 = sor.u32 256, 8
          %1349 = vbcast.lane.b32.xlu0 %v1343, %s1348
          %v1350 = vpop.permute.xlu0 %1349
          %s1352 = sor.u32 256, 16
          %1353 = vbcast.lane.b32.xlu0 %v1343, %s1352
          %v1354 = vpop.permute.xlu0 %1353
          %s1356 = sor.u32 256, 24
          %1357 = vbcast.lane.b32.xlu0 %v1343, %s1356
          %v1358 = vpop.permute.xlu0 %1357
          %v1359 = vlaneseq
          %v1360 = vshrl.u32 %v1359, 7
          %v1361 = vsub.s32 5, %v1360
          %v1362 = vrot.slane %v1211, %v1361
          %1364 = vbcast.lane.b32.xlu0 %v1362, 256
          %v1365 = vpop.permute.xlu0 %1364
          %s1367 = sor.u32 256, 8
          %1368 = vbcast.lane.b32.xlu0 %v1362, %s1367
          %v1369 = vpop.permute.xlu0 %1368
          %s1371 = sor.u32 256, 16
          %1372 = vbcast.lane.b32.xlu0 %v1362, %s1371
          %v1373 = vpop.permute.xlu0 %1372
          %s1375 = sor.u32 256, 24
          %1376 = vbcast.lane.b32.xlu0 %v1362, %s1375
          %v1377 = vpop.permute.xlu0 %1376
          %v1378 = vlaneseq
          %v1379 = vshrl.u32 %v1378, 7
          %v1380 = vsub.s32 6, %v1379
          %v1381 = vrot.slane %v1211, %v1380
          %1383 = vbcast.lane.b32.xlu0 %v1381, 256
          %v1384 = vpop.permute.xlu0 %1383
          %s1386 = sor.u32 256, 8
          %1387 = vbcast.lane.b32.xlu0 %v1381, %s1386
          %v1388 = vpop.permute.xlu0 %1387
          %s1390 = sor.u32 256, 16
          %1391 = vbcast.lane.b32.xlu0 %v1381, %s1390
          %v1392 = vpop.permute.xlu0 %1391
          %s1394 = sor.u32 256, 24
          %1395 = vbcast.lane.b32.xlu0 %v1381, %s1394
          %v1396 = vpop.permute.xlu0 %1395
          %v1397 = vlaneseq
          %v1398 = vshrl.u32 %v1397, 7
          %v1399 = vsub.s32 7, %v1398
          %v1400 = vrot.slane %v1211, %v1399
          %1402 = vbcast.lane.b32.xlu0 %v1400, 256
          %v1403 = vpop.permute.xlu0 %1402
          %s1405 = sor.u32 256, 8
          %1406 = vbcast.lane.b32.xlu0 %v1400, %s1405
          %v1407 = vpop.permute.xlu0 %1406
          %s1409 = sor.u32 256, 16
          %1410 = vbcast.lane.b32.xlu0 %v1400, %s1409
          %v1411 = vpop.permute.xlu0 %1410
          %s1413 = sor.u32 256, 24
          %1414 = vbcast.lane.b32.xlu0 %v1400, %s1413
          %v1415 = vpop.permute.xlu0 %1414
          %v1416 = vadd.f32 %v1270, %v1179
          %v1417 = vadd.f32 %v1270, %v1180
          %v1418 = vadd.f32 %v1274, %v1181
          %v1419 = vadd.f32 %v1274, %v1182
          %v1420 = vadd.f32 %v1278, %v1183
          %v1421 = vadd.f32 %v1278, %v1184
          %v1422 = vadd.f32 %v1282, %v1185
          %v1423 = vadd.f32 %v1282, %v1186
          %v1424 = vadd.f32 %v1289, %v1179
          %v1425 = vadd.f32 %v1289, %v1180
          %v1426 = vadd.f32 %v1293, %v1181
          %v1427 = vadd.f32 %v1293, %v1182
          %v1428 = vadd.f32 %v1297, %v1183
          %v1429 = vadd.f32 %v1297, %v1184
          %v1430 = vadd.f32 %v1301, %v1185
          %v1431 = vadd.f32 %v1301, %v1186
          %v1432 = vadd.f32 %v1308, %v1179
          %v1433 = vadd.f32 %v1308, %v1180
          %v1434 = vadd.f32 %v1312, %v1181
          %v1435 = vadd.f32 %v1312, %v1182
          %v1436 = vadd.f32 %v1316, %v1183
          %v1437 = vadd.f32 %v1316, %v1184
          %v1438 = vadd.f32 %v1320, %v1185
          %v1439 = vadd.f32 %v1320, %v1186
          %v1440 = vadd.f32 %v1327, %v1179
          %v1441 = vadd.f32 %v1327, %v1180
          %v1442 = vadd.f32 %v1331, %v1181
          %v1443 = vadd.f32 %v1331, %v1182
          %v1444 = vadd.f32 %v1335, %v1183
          %v1445 = vadd.f32 %v1335, %v1184
          %v1446 = vadd.f32 %v1339, %v1185
          %v1447 = vadd.f32 %v1339, %v1186
          %v1448 = vadd.f32 %v1346, %v1179
          %v1449 = vadd.f32 %v1346, %v1180
          %v1450 = vadd.f32 %v1350, %v1181
          %v1451 = vadd.f32 %v1350, %v1182
          %v1452 = vadd.f32 %v1354, %v1183
          %v1453 = vadd.f32 %v1354, %v1184
          %v1454 = vadd.f32 %v1358, %v1185
          %v1455 = vadd.f32 %v1358, %v1186
          %v1456 = vadd.f32 %v1365, %v1179
          %v1457 = vadd.f32 %v1365, %v1180
          %v1458 = vadd.f32 %v1369, %v1181
          %v1459 = vadd.f32 %v1369, %v1182
          %v1460 = vadd.f32 %v1373, %v1183
          %v1461 = vadd.f32 %v1373, %v1184
          %v1462 = vadd.f32 %v1377, %v1185
          %v1463 = vadd.f32 %v1377, %v1186
          %v1464 = vadd.f32 %v1384, %v1179
          %v1465 = vadd.f32 %v1384, %v1180
          %v1466 = vadd.f32 %v1388, %v1181
          %v1467 = vadd.f32 %v1388, %v1182
          %v1468 = vadd.f32 %v1392, %v1183
          %v1469 = vadd.f32 %v1392, %v1184
          %v1470 = vadd.f32 %v1396, %v1185
          %v1471 = vadd.f32 %v1396, %v1186
          %v1472 = vadd.f32 %v1403, %v1179
          %v1473 = vadd.f32 %v1403, %v1180
          %v1474 = vadd.f32 %v1407, %v1181
          %v1475 = vadd.f32 %v1407, %v1182
          %v1476 = vadd.f32 %v1411, %v1183
          %v1477 = vadd.f32 %v1411, %v1184
          %v1478 = vadd.f32 %v1415, %v1185
          %v1479 = vadd.f32 %v1415, %v1186
          %v1480 = vlaneseq
          %v1481 = vshrl.u32 %v1480, 7
          %v1482 = vsub.s32 0, %v1481
          %v1483 = vrot.slane %v1238, %v1482
          %v1484 = vlaneseq
          %v1485 = vshrl.u32 %v1484, 7
          %v1486 = vsub.s32 1, %v1485
          %v1487 = vrot.slane %v1238, %v1486
          %v1488 = vlaneseq
          %v1489 = vshrl.u32 %v1488, 7
          %v1490 = vsub.s32 0, %v1489
          %v1491 = vrot.slane %v1252, %v1490
          %v1492 = vlaneseq
          %v1493 = vshrl.u32 %v1492, 7
          %v1494 = vsub.s32 1, %v1493
          %v1495 = vrot.slane %v1252, %v1494
          %v1496 = vlaneseq
          %v1497 = vshrl.u32 %v1496, 7
          %v1498 = vsub.s32 0, %v1497
          %v1499 = vrot.slane %v1260, %v1498
          %v1500 = vlaneseq
          %v1501 = vshrl.u32 %v1500, 7
          %v1502 = vsub.s32 1, %v1501
          %v1503 = vrot.slane %v1260, %v1502
          %v1504 = vlaneseq
          %v1505 = vshrl.u32 %v1504, 7
          %v1506 = vsub.s32 0, %v1505
          %v1507 = vrot.slane %v1262, %v1506
          %v1508 = vlaneseq
          %v1509 = vshrl.u32 %v1508, 7
          %v1510 = vsub.s32 1, %v1509
          %v1511 = vrot.slane %v1262, %v1510
          %v1512 = vlaneseq
          %v1513 = vshrl.u32 %v1512, 7
          %v1514 = vsub.s32 0, %v1513
          %v1515 = vrot.slane %v1245, %v1514
          %v1516 = vlaneseq
          %v1517 = vshrl.u32 %v1516, 7
          %v1518 = vsub.s32 1, %v1517
          %v1519 = vrot.slane %v1245, %v1518
          %v1520 = vlaneseq
          %v1521 = vshrl.u32 %v1520, 7
          %v1522 = vsub.s32 0, %v1521
          %v1523 = vrot.slane %v1259, %v1522
          %v1524 = vlaneseq
          %v1525 = vshrl.u32 %v1524, 7
          %v1526 = vsub.s32 1, %v1525
          %v1527 = vrot.slane %v1259, %v1526
          %v1528 = vlaneseq
          %v1529 = vshrl.u32 %v1528, 7
          %v1530 = vsub.s32 0, %v1529
          %v1531 = vrot.slane %v1261, %v1530
          %v1532 = vlaneseq
          %v1533 = vshrl.u32 %v1532, 7
          %v1534 = vsub.s32 1, %v1533
          %v1535 = vrot.slane %v1261, %v1534
          %v1536 = vlaneseq
          %v1537 = vshrl.u32 %v1536, 7
          %v1538 = vsub.s32 0, %v1537
          %v1539 = vrot.slane %v1263, %v1538
          %v1540 = vlaneseq
          %v1541 = vshrl.u32 %v1540, 7
          %v1542 = vsub.s32 1, %v1541
          %v1543 = vrot.slane %v1263, %v1542
          %v1560 = vmul.f32 %v1483, %v1416
          %v1561 = vmul.f32 %v1487, %v1417
          %v1562 = vmul.f32 %v1483, %v1418
          %v1563 = vmul.f32 %v1487, %v1419
          %v1564 = vmul.f32 %v1483, %v1420
          %v1565 = vmul.f32 %v1487, %v1421
          %v1566 = vmul.f32 %v1483, %v1422
          %v1567 = vmul.f32 %v1487, %v1423
          %v1568 = vmul.f32 %v1491, %v1424
          %v1569 = vmul.f32 %v1495, %v1425
          %v1570 = vmul.f32 %v1491, %v1426
          %v1571 = vmul.f32 %v1495, %v1427
          %v1572 = vmul.f32 %v1491, %v1428
          %v1573 = vmul.f32 %v1495, %v1429
          %v1574 = vmul.f32 %v1491, %v1430
          %v1575 = vmul.f32 %v1495, %v1431
          %v1576 = vmul.f32 %v1499, %v1432
          %v1577 = vmul.f32 %v1503, %v1433
          %v1578 = vmul.f32 %v1499, %v1434
          %v1579 = vmul.f32 %v1503, %v1435
          %v1580 = vmul.f32 %v1499, %v1436
          %v1581 = vmul.f32 %v1503, %v1437
          %v1582 = vmul.f32 %v1499, %v1438
          %v1583 = vmul.f32 %v1503, %v1439
          %v1584 = vmul.f32 %v1507, %v1440
          %v1585 = vmul.f32 %v1511, %v1441
          %v1586 = vmul.f32 %v1507, %v1442
          %v1587 = vmul.f32 %v1511, %v1443
          %v1588 = vmul.f32 %v1507, %v1444
          %v1589 = vmul.f32 %v1511, %v1445
          %v1590 = vmul.f32 %v1507, %v1446
          %v1591 = vmul.f32 %v1511, %v1447
          %v1592 = vmul.f32 %v1515, %v1448
          %v1593 = vmul.f32 %v1519, %v1449
          %v1594 = vmul.f32 %v1515, %v1450
          %v1595 = vmul.f32 %v1519, %v1451
          %v1596 = vmul.f32 %v1515, %v1452
          %v1597 = vmul.f32 %v1519, %v1453
          %v1598 = vmul.f32 %v1515, %v1454
          %v1599 = vmul.f32 %v1519, %v1455
          %v1600 = vmul.f32 %v1523, %v1456
          %v1601 = vmul.f32 %v1527, %v1457
          %v1602 = vmul.f32 %v1523, %v1458
          %v1603 = vmul.f32 %v1527, %v1459
          %v1604 = vmul.f32 %v1523, %v1460
          %v1605 = vmul.f32 %v1527, %v1461
          %v1606 = vmul.f32 %v1523, %v1462
          %v1607 = vmul.f32 %v1527, %v1463
          %v1608 = vmul.f32 %v1531, %v1464
          %v1609 = vmul.f32 %v1535, %v1465
          %v1610 = vmul.f32 %v1531, %v1466
          %v1611 = vmul.f32 %v1535, %v1467
          %v1612 = vmul.f32 %v1531, %v1468
          %v1613 = vmul.f32 %v1535, %v1469
          %v1614 = vmul.f32 %v1531, %v1470
          %v1615 = vmul.f32 %v1535, %v1471
          %v1616 = vmul.f32 %v1539, %v1472
          %v1617 = vmul.f32 %v1543, %v1473
          %v1618 = vmul.f32 %v1539, %v1474
          %v1619 = vmul.f32 %v1543, %v1475
          %v1620 = vmul.f32 %v1539, %v1476
          %v1621 = vmul.f32 %v1543, %v1477
          %v1622 = vmul.f32 %v1539, %v1478
          %v1623 = vmul.f32 %v1543, %v1479
          %1625 = vset.pattern.permute.xlu0 0
          %1626 = vperm.xlu0 %1625, %v1187
          %v1627 = vpop.permute.xlu0 %1626
          %1630 = vset.pattern.permute.xlu0 0
          %1631 = vperm.xlu0 %1630, %v1188
          %v1632 = vpop.permute.xlu0 %1631
          %1635 = vset.pattern.permute.xlu0 0
          %1636 = vperm.xlu0 %1635, %v1189
          %v1637 = vpop.permute.xlu0 %1636
          %1640 = vset.pattern.permute.xlu0 0
          %1641 = vperm.xlu0 %1640, %v1190
          %v1642 = vpop.permute.xlu0 %1641
          %v1644 = vadd.f32 %v1560, %v1627
          %v1645 = vadd.f32 %v1561, %v1627
          %v1646 = vadd.f32 %v1562, %v1632
          %v1647 = vadd.f32 %v1563, %v1632
          %v1648 = vadd.f32 %v1564, %v1637
          %v1649 = vadd.f32 %v1565, %v1637
          %v1650 = vadd.f32 %v1566, %v1642
          %v1651 = vadd.f32 %v1567, %v1642
          %v1652 = vadd.f32 %v1568, %v1627
          %v1653 = vadd.f32 %v1569, %v1627
          %v1654 = vadd.f32 %v1570, %v1632
          %v1655 = vadd.f32 %v1571, %v1632
          %v1656 = vadd.f32 %v1572, %v1637
          %v1657 = vadd.f32 %v1573, %v1637
          %v1658 = vadd.f32 %v1574, %v1642
          %v1659 = vadd.f32 %v1575, %v1642
          %v1660 = vadd.f32 %v1576, %v1627
          %v1661 = vadd.f32 %v1577, %v1627
          %v1662 = vadd.f32 %v1578, %v1632
          %v1663 = vadd.f32 %v1579, %v1632
          %v1664 = vadd.f32 %v1580, %v1637
          %v1665 = vadd.f32 %v1581, %v1637
          %v1666 = vadd.f32 %v1582, %v1642
          %v1667 = vadd.f32 %v1583, %v1642
          %v1668 = vadd.f32 %v1584, %v1627
          %v1669 = vadd.f32 %v1585, %v1627
          %v1670 = vadd.f32 %v1586, %v1632
          %v1671 = vadd.f32 %v1587, %v1632
          %v1672 = vadd.f32 %v1588, %v1637
          %v1673 = vadd.f32 %v1589, %v1637
          %v1674 = vadd.f32 %v1590, %v1642
          %v1675 = vadd.f32 %v1591, %v1642
          %v1676 = vadd.f32 %v1592, %v1627
          %v1677 = vadd.f32 %v1593, %v1627
          %v1678 = vadd.f32 %v1594, %v1632
          %v1679 = vadd.f32 %v1595, %v1632
          %v1680 = vadd.f32 %v1596, %v1637
          %v1681 = vadd.f32 %v1597, %v1637
          %v1682 = vadd.f32 %v1598, %v1642
          %v1683 = vadd.f32 %v1599, %v1642
          %v1684 = vadd.f32 %v1600, %v1627
          %v1685 = vadd.f32 %v1601, %v1627
          %v1686 = vadd.f32 %v1602, %v1632
          %v1687 = vadd.f32 %v1603, %v1632
          %v1688 = vadd.f32 %v1604, %v1637
          %v1689 = vadd.f32 %v1605, %v1637
          %v1690 = vadd.f32 %v1606, %v1642
          %v1691 = vadd.f32 %v1607, %v1642
          %v1692 = vadd.f32 %v1608, %v1627
          %v1693 = vadd.f32 %v1609, %v1627
          %v1694 = vadd.f32 %v1610, %v1632
          %v1695 = vadd.f32 %v1611, %v1632
          %v1696 = vadd.f32 %v1612, %v1637
          %v1697 = vadd.f32 %v1613, %v1637
          %v1698 = vadd.f32 %v1614, %v1642
          %v1699 = vadd.f32 %v1615, %v1642
          %v1700 = vadd.f32 %v1616, %v1627
          %v1701 = vadd.f32 %v1617, %v1627
          %v1702 = vadd.f32 %v1618, %v1632
          %v1703 = vadd.f32 %v1619, %v1632
          %v1704 = vadd.f32 %v1620, %v1637
          %v1705 = vadd.f32 %v1621, %v1637
          %v1706 = vadd.f32 %v1622, %v1642
          %v1707 = vadd.f32 %v1623, %v1642
          %v1708 = vmax.f32 %v1644, 0.0
          %v1709 = vmax.f32 %v1645, 0.0
          %v1710 = vmax.f32 %v1646, 0.0
          %v1711 = vmax.f32 %v1647, 0.0
          %v1712 = vmax.f32 %v1648, 0.0
          %v1713 = vmax.f32 %v1649, 0.0
          %v1714 = vmax.f32 %v1650, 0.0
          %v1715 = vmax.f32 %v1651, 0.0
          %v1716 = vmax.f32 %v1652, 0.0
          %v1717 = vmax.f32 %v1653, 0.0
          %v1718 = vmax.f32 %v1654, 0.0
          %v1719 = vmax.f32 %v1655, 0.0
          %v1720 = vmax.f32 %v1656, 0.0
          %v1721 = vmax.f32 %v1657, 0.0
          %v1722 = vmax.f32 %v1658, 0.0
          %v1723 = vmax.f32 %v1659, 0.0
          %v1724 = vmax.f32 %v1660, 0.0
          %v1725 = vmax.f32 %v1661, 0.0
          %v1726 = vmax.f32 %v1662, 0.0
          %v1727 = vmax.f32 %v1663, 0.0
          %v1728 = vmax.f32 %v1664, 0.0
          %v1729 = vmax.f32 %v1665, 0.0
          %v1730 = vmax.f32 %v1666, 0.0
          %v1731 = vmax.f32 %v1667, 0.0
          %v1732 = vmax.f32 %v1668, 0.0
          %v1733 = vmax.f32 %v1669, 0.0
          %v1734 = vmax.f32 %v1670, 0.0
          %v1735 = vmax.f32 %v1671, 0.0
          %v1736 = vmax.f32 %v1672, 0.0
          %v1737 = vmax.f32 %v1673, 0.0
          %v1738 = vmax.f32 %v1674, 0.0
          %v1739 = vmax.f32 %v1675, 0.0
          %v1740 = vmax.f32 %v1676, 0.0
          %v1741 = vmax.f32 %v1677, 0.0
          %v1742 = vmax.f32 %v1678, 0.0
          %v1743 = vmax.f32 %v1679, 0.0
          %v1744 = vmax.f32 %v1680, 0.0
          %v1745 = vmax.f32 %v1681, 0.0
          %v1746 = vmax.f32 %v1682, 0.0
          %v1747 = vmax.f32 %v1683, 0.0
          %v1748 = vmax.f32 %v1684, 0.0
          %v1749 = vmax.f32 %v1685, 0.0
          %v1750 = vmax.f32 %v1686, 0.0
          %v1751 = vmax.f32 %v1687, 0.0
          %v1752 = vmax.f32 %v1688, 0.0
          %v1753 = vmax.f32 %v1689, 0.0
          %v1754 = vmax.f32 %v1690, 0.0
          %v1755 = vmax.f32 %v1691, 0.0
          %v1756 = vmax.f32 %v1692, 0.0
          %v1757 = vmax.f32 %v1693, 0.0
          %v1758 = vmax.f32 %v1694, 0.0
          %v1759 = vmax.f32 %v1695, 0.0
          %v1760 = vmax.f32 %v1696, 0.0
          %v1761 = vmax.f32 %v1697, 0.0
          %v1762 = vmax.f32 %v1698, 0.0
          %v1763 = vmax.f32 %v1699, 0.0
          %v1764 = vmax.f32 %v1700, 0.0
          %v1765 = vmax.f32 %v1701, 0.0
          %v1766 = vmax.f32 %v1702, 0.0
          %v1767 = vmax.f32 %v1703, 0.0
          %v1768 = vmax.f32 %v1704, 0.0
          %v1769 = vmax.f32 %v1705, 0.0
          %v1770 = vmax.f32 %v1706, 0.0
          %v1771 = vmax.f32 %v1707, 0.0
          %1773 = vset.pattern.permute.xlu0 0
          %1774 = vperm.xlu0 %1773, %v1191
          %v1775 = vpop.permute.xlu0 %1774
          %1778 = vset.pattern.permute.xlu0 0
          %1779 = vperm.xlu0 %1778, %v1192
          %v1780 = vpop.permute.xlu0 %1779
          %1783 = vset.pattern.permute.xlu0 0
          %1784 = vperm.xlu0 %1783, %v1193
          %v1785 = vpop.permute.xlu0 %1784
          %1788 = vset.pattern.permute.xlu0 0
          %1789 = vperm.xlu0 %1788, %v1194
          %v1790 = vpop.permute.xlu0 %1789
          %v1792 = vmul.f32 %v1708, %v1775
          %v1793 = vmul.f32 %v1709, %v1775
          %v1794 = vmul.f32 %v1710, %v1780
          %v1795 = vmul.f32 %v1711, %v1780
          %v1796 = vmul.f32 %v1712, %v1785
          %v1797 = vmul.f32 %v1713, %v1785
          %v1798 = vmul.f32 %v1714, %v1790
          %v1799 = vmul.f32 %v1715, %v1790
          %v1800 = vmul.f32 %v1716, %v1775
          %v1801 = vmul.f32 %v1717, %v1775
          %v1802 = vmul.f32 %v1718, %v1780
          %v1803 = vmul.f32 %v1719, %v1780
          %v1804 = vmul.f32 %v1720, %v1785
          %v1805 = vmul.f32 %v1721, %v1785
          %v1806 = vmul.f32 %v1722, %v1790
          %v1807 = vmul.f32 %v1723, %v1790
          %v1808 = vmul.f32 %v1724, %v1775
          %v1809 = vmul.f32 %v1725, %v1775
          %v1810 = vmul.f32 %v1726, %v1780
          %v1811 = vmul.f32 %v1727, %v1780
          %v1812 = vmul.f32 %v1728, %v1785
          %v1813 = vmul.f32 %v1729, %v1785
          %v1814 = vmul.f32 %v1730, %v1790
          %v1815 = vmul.f32 %v1731, %v1790
          %v1816 = vmul.f32 %v1732, %v1775
          %v1817 = vmul.f32 %v1733, %v1775
          %v1818 = vmul.f32 %v1734, %v1780
          %v1819 = vmul.f32 %v1735, %v1780
          %v1820 = vmul.f32 %v1736, %v1785
          %v1821 = vmul.f32 %v1737, %v1785
          %v1822 = vmul.f32 %v1738, %v1790
          %v1823 = vmul.f32 %v1739, %v1790
          %v1824 = vmul.f32 %v1740, %v1775
          %v1825 = vmul.f32 %v1741, %v1775
          %v1826 = vmul.f32 %v1742, %v1780
          %v1827 = vmul.f32 %v1743, %v1780
          %v1828 = vmul.f32 %v1744, %v1785
          %v1829 = vmul.f32 %v1745, %v1785
          %v1830 = vmul.f32 %v1746, %v1790
          %v1831 = vmul.f32 %v1747, %v1790
          %v1832 = vmul.f32 %v1748, %v1775
          %v1833 = vmul.f32 %v1749, %v1775
          %v1834 = vmul.f32 %v1750, %v1780
          %v1835 = vmul.f32 %v1751, %v1780
          %v1836 = vmul.f32 %v1752, %v1785
          %v1837 = vmul.f32 %v1753, %v1785
          %v1838 = vmul.f32 %v1754, %v1790
          %v1839 = vmul.f32 %v1755, %v1790
          %v1840 = vmul.f32 %v1756, %v1775
          %v1841 = vmul.f32 %v1757, %v1775
          %v1842 = vmul.f32 %v1758, %v1780
          %v1843 = vmul.f32 %v1759, %v1780
          %v1844 = vmul.f32 %v1760, %v1785
          %v1845 = vmul.f32 %v1761, %v1785
          %v1846 = vmul.f32 %v1762, %v1790
          %v1847 = vmul.f32 %v1763, %v1790
          %v1848 = vmul.f32 %v1764, %v1775
          %v1849 = vmul.f32 %v1765, %v1775
          %v1850 = vmul.f32 %v1766, %v1780
          %v1851 = vmul.f32 %v1767, %v1780
          %v1852 = vmul.f32 %v1768, %v1785
          %v1853 = vmul.f32 %v1769, %v1785
          %v1854 = vmul.f32 %v1770, %v1790
          %v1855 = vmul.f32 %v1771, %v1790
          %v1856 = vadd.f32 %v1792, %v1794
          %v1857 = vadd.f32 %v1856, %v1796
          %v1858 = vadd.f32 %v1857, %v1798
          %v1859 = vrot.slane %v1858, 4
          %v1860 = vadd.f32 %v1858, %v1859
          %v1861 = vrot.slane %v1860, 2
          %v1862 = vadd.f32 %v1860, %v1861
          %v1863 = vrot.slane %v1862, 1
          %v1864 = vadd.f32 %v1862, %v1863
          %v1865 = vadd.f32 %v1793, %v1795
          %v1866 = vadd.f32 %v1865, %v1797
          %v1867 = vadd.f32 %v1866, %v1799
          %v1868 = vrot.slane %v1867, 4
          %v1869 = vadd.f32 %v1867, %v1868
          %v1870 = vrot.slane %v1869, 2
          %v1871 = vadd.f32 %v1869, %v1870
          %v1872 = vrot.slane %v1871, 1
          %v1873 = vadd.f32 %v1871, %v1872
          %v1874 = vadd.f32 %v1800, %v1802
          %v1875 = vadd.f32 %v1874, %v1804
          %v1876 = vadd.f32 %v1875, %v1806
          %v1877 = vrot.slane %v1876, 4
          %v1878 = vadd.f32 %v1876, %v1877
          %v1879 = vrot.slane %v1878, 2
          %v1880 = vadd.f32 %v1878, %v1879
          %v1881 = vrot.slane %v1880, 1
          %v1882 = vadd.f32 %v1880, %v1881
          %v1883 = vadd.f32 %v1801, %v1803
          %v1884 = vadd.f32 %v1883, %v1805
          %v1885 = vadd.f32 %v1884, %v1807
          %v1886 = vrot.slane %v1885, 4
          %v1887 = vadd.f32 %v1885, %v1886
          %v1888 = vrot.slane %v1887, 2
          %v1889 = vadd.f32 %v1887, %v1888
          %v1890 = vrot.slane %v1889, 1
          %v1891 = vadd.f32 %v1889, %v1890
          %v1892 = vadd.f32 %v1808, %v1810
          %v1893 = vadd.f32 %v1892, %v1812
          %v1894 = vadd.f32 %v1893, %v1814
          %v1895 = vrot.slane %v1894, 4
          %v1896 = vadd.f32 %v1894, %v1895
          %v1897 = vrot.slane %v1896, 2
          %v1898 = vadd.f32 %v1896, %v1897
          %v1899 = vrot.slane %v1898, 1
          %v1900 = vadd.f32 %v1898, %v1899
          %v1901 = vadd.f32 %v1809, %v1811
          %v1902 = vadd.f32 %v1901, %v1813
          %v1903 = vadd.f32 %v1902, %v1815
          %v1904 = vrot.slane %v1903, 4
          %v1905 = vadd.f32 %v1903, %v1904
          %v1906 = vrot.slane %v1905, 2
          %v1907 = vadd.f32 %v1905, %v1906
          %v1908 = vrot.slane %v1907, 1
          %v1909 = vadd.f32 %v1907, %v1908
          %v1910 = vadd.f32 %v1816, %v1818
          %v1911 = vadd.f32 %v1910, %v1820
          %v1912 = vadd.f32 %v1911, %v1822
          %v1913 = vrot.slane %v1912, 4
          %v1914 = vadd.f32 %v1912, %v1913
          %v1915 = vrot.slane %v1914, 2
          %v1916 = vadd.f32 %v1914, %v1915
          %v1917 = vrot.slane %v1916, 1
          %v1918 = vadd.f32 %v1916, %v1917
          %v1919 = vadd.f32 %v1817, %v1819
          %v1920 = vadd.f32 %v1919, %v1821
          %v1921 = vadd.f32 %v1920, %v1823
          %v1922 = vrot.slane %v1921, 4
          %v1923 = vadd.f32 %v1921, %v1922
          %v1924 = vrot.slane %v1923, 2
          %v1925 = vadd.f32 %v1923, %v1924
          %v1926 = vrot.slane %v1925, 1
          %v1927 = vadd.f32 %v1925, %v1926
          %v1928 = vadd.f32 %v1824, %v1826
          %v1929 = vadd.f32 %v1928, %v1828
          %v1930 = vadd.f32 %v1929, %v1830
          %v1931 = vrot.slane %v1930, 4
          %v1932 = vadd.f32 %v1930, %v1931
          %v1933 = vrot.slane %v1932, 2
          %v1934 = vadd.f32 %v1932, %v1933
          %v1935 = vrot.slane %v1934, 1
          %v1936 = vadd.f32 %v1934, %v1935
          %v1937 = vadd.f32 %v1825, %v1827
          %v1938 = vadd.f32 %v1937, %v1829
          %v1939 = vadd.f32 %v1938, %v1831
          %v1940 = vrot.slane %v1939, 4
          %v1941 = vadd.f32 %v1939, %v1940
          %v1942 = vrot.slane %v1941, 2
          %v1943 = vadd.f32 %v1941, %v1942
          %v1944 = vrot.slane %v1943, 1
          %v1945 = vadd.f32 %v1943, %v1944
          %v1946 = vadd.f32 %v1832, %v1834
          %v1947 = vadd.f32 %v1946, %v1836
          %v1948 = vadd.f32 %v1947, %v1838
          %v1949 = vrot.slane %v1948, 4
          %v1950 = vadd.f32 %v1948, %v1949
          %v1951 = vrot.slane %v1950, 2
          %v1952 = vadd.f32 %v1950, %v1951
          %v1953 = vrot.slane %v1952, 1
          %v1954 = vadd.f32 %v1952, %v1953
          %v1955 = vadd.f32 %v1833, %v1835
          %v1956 = vadd.f32 %v1955, %v1837
          %v1957 = vadd.f32 %v1956, %v1839
          %v1958 = vrot.slane %v1957, 4
          %v1959 = vadd.f32 %v1957, %v1958
          %v1960 = vrot.slane %v1959, 2
          %v1961 = vadd.f32 %v1959, %v1960
          %v1962 = vrot.slane %v1961, 1
          %v1963 = vadd.f32 %v1961, %v1962
          %v1964 = vadd.f32 %v1840, %v1842
          %v1965 = vadd.f32 %v1964, %v1844
          %v1966 = vadd.f32 %v1965, %v1846
          %v1967 = vrot.slane %v1966, 4
          %v1968 = vadd.f32 %v1966, %v1967
          %v1969 = vrot.slane %v1968, 2
          %v1970 = vadd.f32 %v1968, %v1969
          %v1971 = vrot.slane %v1970, 1
          %v1972 = vadd.f32 %v1970, %v1971
          %v1973 = vadd.f32 %v1841, %v1843
          %v1974 = vadd.f32 %v1973, %v1845
          %v1975 = vadd.f32 %v1974, %v1847
          %v1976 = vrot.slane %v1975, 4
          %v1977 = vadd.f32 %v1975, %v1976
          %v1978 = vrot.slane %v1977, 2
          %v1979 = vadd.f32 %v1977, %v1978
          %v1980 = vrot.slane %v1979, 1
          %v1981 = vadd.f32 %v1979, %v1980
          %v1982 = vadd.f32 %v1848, %v1850
          %v1983 = vadd.f32 %v1982, %v1852
          %v1984 = vadd.f32 %v1983, %v1854
          %v1985 = vrot.slane %v1984, 4
          %v1986 = vadd.f32 %v1984, %v1985
          %v1987 = vrot.slane %v1986, 2
          %v1988 = vadd.f32 %v1986, %v1987
          %v1989 = vrot.slane %v1988, 1
          %v1990 = vadd.f32 %v1988, %v1989
          %v1991 = vadd.f32 %v1849, %v1851
          %v1992 = vadd.f32 %v1991, %v1853
          %v1993 = vadd.f32 %v1992, %v1855
          %v1994 = vrot.slane %v1993, 4
          %v1995 = vadd.f32 %v1993, %v1994
          %v1996 = vrot.slane %v1995, 2
          %v1997 = vadd.f32 %v1995, %v1996
          %v1998 = vrot.slane %v1997, 1
          %v1999 = vadd.f32 %v1997, %v1998
          %s2000 = scalar_lea.vmem %s632, %s1202
          %v2001 = vld [vmem:[%s2000] sm:$0xff]
          %2003 = vset.pattern.permute.xlu0 0
          %2004 = vperm.xlu0 %2003, %v2001
          %v2005 = vpop.permute.xlu0 %2004
          %v2006 = vrot.slane %v2005, 1
          %v2007 = vrot.slane %v2005, 2
          %v2008 = vrot.slane %v2005, 3
          %v2009 = vrot.slane %v2005, 4
          %v2010 = vrot.slane %v2005, 5
          %v2011 = vrot.slane %v2005, 6
          %v2012 = vrot.slane %v2005, 7
          %v2021 = vadd.f32 %v1864, %v2005
          %v2022 = vadd.f32 %v1873, %v2005
          %v2023 = vadd.f32 %v1882, %v2006
          %v2024 = vadd.f32 %v1891, %v2006
          %v2025 = vadd.f32 %v1900, %v2007
          %v2026 = vadd.f32 %v1909, %v2007
          %v2027 = vadd.f32 %v1918, %v2008
          %v2028 = vadd.f32 %v1927, %v2008
          %v2029 = vadd.f32 %v1936, %v2009
          %v2030 = vadd.f32 %v1945, %v2009
          %v2031 = vadd.f32 %v1954, %v2010
          %v2032 = vadd.f32 %v1963, %v2010
          %v2033 = vadd.f32 %v1972, %v2011
          %v2034 = vadd.f32 %v1981, %v2011
          %v2035 = vadd.f32 %v1990, %v2012
          %v2036 = vadd.f32 %v1999, %v2012
          %v2038 = vlaneseq
          %v2039 = vshrl.u32 %v2038, 7
          %v2040 = vsub.s32 0, %v2039
          %v2041 = vrot.slane %v1195, %v2040
          %v2042 = vlaneseq
          %v2043 = vshrl.u32 %v2042, 7
          %v2044 = vsub.s32 1, %v2043
          %v2045 = vrot.slane %v1195, %v2044
          %v2048 = vadd.f32 %v2021, %v2041
          %v2049 = vadd.f32 %v2022, %v2045
          %v2050 = vadd.f32 %v2023, %v2041
          %v2051 = vadd.f32 %v2024, %v2045
          %v2052 = vadd.f32 %v2025, %v2041
          %v2053 = vadd.f32 %v2026, %v2045
          %v2054 = vadd.f32 %v2027, %v2041
          %v2055 = vadd.f32 %v2028, %v2045
          %v2056 = vadd.f32 %v2029, %v2041
          %v2057 = vadd.f32 %v2030, %v2045
          %v2058 = vadd.f32 %v2031, %v2041
          %v2059 = vadd.f32 %v2032, %v2045
          %v2060 = vadd.f32 %v2033, %v2041
          %v2061 = vadd.f32 %v2034, %v2045
          %v2062 = vadd.f32 %v2035, %v2041
          %v2063 = vadd.f32 %v2036, %v2045
          %v2080 = vrot.slane %v2050, 7
          %vm2081 = vcmask 1041409
          %v2082 = vsel %vm2081, %v2080, %v2048
          %v2083 = vrot.slane %v2052, 6
          %vm2084 = vcmask 1042434
          %v2085 = vsel %vm2084, %v2083, %v2082
          %v2086 = vrot.slane %v2054, 5
          %vm2087 = vcmask 1043459
          %v2088 = vsel %vm2087, %v2086, %v2085
          %v2089 = vrot.slane %v2056, 4
          %vm2090 = vcmask 1044484
          %v2091 = vsel %vm2090, %v2089, %v2088
          %v2092 = vrot.slane %v2058, 3
          %vm2093 = vcmask 1045509
          %v2094 = vsel %vm2093, %v2092, %v2091
          %v2095 = vrot.slane %v2060, 2
          %vm2096 = vcmask 1046534
          %v2097 = vsel %vm2096, %v2095, %v2094
          %v2098 = vrot.slane %v2062, 1
          %vm2099 = vcmask 1047559
          %v2100 = vsel %vm2099, %v2098, %v2097
          %v2101 = vrot.slane %v2051, 7
          %v2102 = vsel %vm2081, %v2101, %v2049
          %v2103 = vrot.slane %v2053, 6
          %v2104 = vsel %vm2084, %v2103, %v2102
          %v2105 = vrot.slane %v2055, 5
          %v2106 = vsel %vm2087, %v2105, %v2104
          %v2107 = vrot.slane %v2057, 4
          %v2108 = vsel %vm2090, %v2107, %v2106
          %v2109 = vrot.slane %v2059, 3
          %v2110 = vsel %vm2093, %v2109, %v2108
          %v2111 = vrot.slane %v2061, 2
          %v2112 = vsel %vm2096, %v2111, %v2110
          %v2113 = vrot.slane %v2063, 1
          %v2114 = vsel %vm2099, %v2113, %v2112
          %s2117 = smul.addr %s1205, 8
          %s2118 = scalar_lea.vmem %s564, %s2117 [#allocation3]
          %2119 = vst [vmem:[%s2118] sm:$0xff] %v2100
          %2120 = vst [vmem:[%s2118 + $0x8] sm:$0xff] %v2114
        $region65: #{tpu_custom_call.1} parent=59 // loop_footer
          %s1201 = sadd.s32 1, %s1197
        $region66: #{tpu_custom_call.1} parent=59 // loop_footer_branch
          %1196 = sbr.rel target = $region62
        $region67: #{tpu_custom_call.1} parent=59 // loop_exit
          _
        %s2121 = sand.u32 %s321, 1
        %s2122 = scalar_lea.sflag [#allocation4], %s2121
        %s2123 = sand.u32 %s321, 1
        %s2124 = smul.addr %s2123, 256
        %s2125 = scalar_lea.vmem [#allocation3], %s2124
        // Predicated region
        $region68: #{tpu_custom_call.1} parent=59 // pred_check
          %p2126 = pneg %p331
        $region69: #{tpu_custom_call.1} parent=59 // pred_check_branch
          %2128 = sbr.rel (%p2126) target = $region71
        $region70: #{tpu_custom_call.1} parent=59 // pred_region
          %s2129 = smul.u32 16, %s29
          %s2130 = smul.u32 2, %s31
          %s2132 = ssub.s32 4096, 4096
          %2133 = vsyncadd %s2122, %s2132
          %s2134 = smul.addr %s2129, 2
          %s2135 = sadd.s32 %s2130, %s2134
          %s2136 = smul.addr %s30, 64
          %s2137 = sadd.s32 %s2135, %s2136
          %s2138 = smul.addr %s2137, 128
          %s2139 = scalar_lea.hbm %s10, %s2138
          %s2140 = sshll.u32 %s2125, 4
          %s2141 = int_to_ptr.vmem [resolvable:$true] %s2140
          %2146 = dma.vmem_to_hbm [thread:$0]  %s2141, 4096, %s2139, %s2122, 256, 256, 16
        $region71: #{tpu_custom_call.1} parent=59 // pred_fallthru
          _
      $region60: #{tpu_custom_call.1} parent=5 // pred_fallthru
        _
      %p2147 = scmp.le.s32.totalorder 2, %s19
      // Predicated region
      $region72: #{tpu_custom_call.1} parent=5 // pred_check
        %p2148 = pneg %p2147
      $region73: #{tpu_custom_call.1} parent=5 // pred_check_branch
        %2150 = sbr.rel (%p2148) target = $region75
      $region74: #{tpu_custom_call.1} parent=5 // pred_region
        %s2151 = ssub.s32 %s19, 2
        // Predicated region
        $region76: #{tpu_custom_call.1} parent=74 // pred_check
          %p2152 = pneg %p337
        $region77: #{tpu_custom_call.1} parent=74 // pred_check_branch
          %2154 = sbr.rel (%p2152) target = $region79
        $region78: #{tpu_custom_call.1} parent=74 // pred_region
          %s2155 = sand.u32 %s322, 1
          %s2156 = scalar_lea.sflag [#allocation4], %s2155
          %s2157 = sand.u32 %s322, 1
          %s2158 = smul.addr %s2157, 256
          %s2159 = scalar_lea.vmem [#allocation3], %s2158
          %2160 = dma.done %s2156, 4096
        $region79: #{tpu_custom_call.1} parent=74 // pred_fallthru
          _
      $region75: #{tpu_custom_call.1} parent=5 // pred_fallthru
        _
    $region6: #{tpu_custom_call.1} parent=1 // loop_footer
      %s23 = sadd.s32 1, %s19
    $region7: #{tpu_custom_call.1} parent=1 // loop_footer_branch
      %18 = sbr.rel target = $region3
    $region8: #{tpu_custom_call.1} parent=1 // loop_exit
      _
    %2161 = vsyncpa [#allocation4], 1
    %s2162 = scalar_lea.sflag [#allocation4], 1
    %2163 = vsyncpa %s2162, 1

</llo_original>
